<compile_context>
chip_gen: v7x
topology: tpu7x:2x2x1
jax: 0.10.0
libtpu: 0.0.40
codegen_flags: <defaults>
</compile_context>

<pallas_src>
import functools

import jax
import jax.numpy as jnp
from jax.experimental import pallas as pl
from jax.experimental.pallas import tpu as pltpu

INPUT_SIZE = 28 * 28          # 784 (kept un-padded; full-dim K block)
H1, H2, H3 = 512, 256, 128
OUTPUT_SIZE = 10
OUTPUT_PAD = 128              # lane-dense output width


def mlp_kernel(x_ref, w1_ref, b1_ref, w2_ref, b2_ref, w3_ref, b3_ref,
               w4_ref, b4_ref, o_ref):
    # fc1 + ReLU (dropout1 == identity in eval mode). Input cast f32->bf16
    # in VMEM (no host-side copy); all matmuls accumulate in f32 on the MXU.
    x = x_ref[...].astype(jnp.bfloat16)
    h = jnp.dot(x, w1_ref[...], preferred_element_type=jnp.float32)
    h = jnp.maximum(h + b1_ref[...], 0.0)
    # fc2 + ReLU (dropout2 == identity)
    h = jnp.dot(h.astype(jnp.bfloat16), w2_ref[...],
                preferred_element_type=jnp.float32)
    h = jnp.maximum(h + b2_ref[...], 0.0)
    # fc3 + ReLU (dropout3 == identity)
    h = jnp.dot(h.astype(jnp.bfloat16), w3_ref[...],
                preferred_element_type=jnp.float32)
    h = jnp.maximum(h + b3_ref[...], 0.0)
    # fc4 (no activation); columns 10..127 of w4/b4 are zero padding.
    out = jnp.dot(h.astype(jnp.bfloat16), w4_ref[...],
                  preferred_element_type=jnp.float32) + b4_ref[...]
    o_ref[...] = out.astype(o_ref.dtype)   # bf16 store halves output writeback
    # TODO(synk): nn.Dropout(0.3) in training mode would need
    # pltpu.prng_random_bits masking + 1/(1-p) scaling; this matches eval().


def prepare_params(params):
    """One-time layout prep (bf16 cast + output-lane padding).

    Call once and reuse the result across forward calls so no per-call
    pad/cast passes run over the weights.
    """
    (w1, b1), (w2, b2), (w3, b3), (w4, b4) = params
    w1p = w1.astype(jnp.bfloat16)                        # (784, 512), K un-padded
    w2p = w2.astype(jnp.bfloat16)                        # (512, 256)
    w3p = w3.astype(jnp.bfloat16)                        # (256, 128)
    # Pad N 10 -> 128 with zero columns so the output store is lane-dense.
    w4p = jnp.zeros((H3, OUTPUT_PAD), jnp.bfloat16)
    w4p = w4p.at[:, :OUTPUT_SIZE].set(w4.astype(jnp.bfloat16))
    b1p = b1.reshape(1, H1).astype(jnp.float32)
    b2p = b2.reshape(1, H2).astype(jnp.float32)
    b3p = b3.reshape(1, H3).astype(jnp.float32)
    b4p = jnp.zeros((1, OUTPUT_PAD), jnp.float32)
    b4p = b4p.at[:, :OUTPUT_SIZE].set(b4.reshape(1, OUTPUT_SIZE).astype(jnp.float32))
    return (w1p, b1p, w2p, b2p, w3p, b3p, w4p, b4p)


def _round_up(v, m):
    return ((v + m - 1) // m) * m


def _choose_bm(batch, bm):
    """Pick a balanced batch tile. No host-side batch padding is done."""
    if batch <= bm:
        # Whole batch in one block (block == full dim => exempt from tiling
        # rules). For moderate batches split in two so both v7x TensorCores
        # get a grid block.
        if batch >= 256 and batch % 32 == 0:
            return batch // 2
        return batch
    # Multiple blocks: balance them, rounded to the 16-row bf16 sublane tile.
    n_blocks = pl.cdiv(batch, bm)
    return _round_up(pl.cdiv(batch, n_blocks), 16)


@functools.partial(jax.jit, static_argnames=("bm",))
def mlp_forward(x, prepped, *, bm=512):
    w1p, b1p, w2p, b2p, w3p, b3p, w4p, b4p = prepped
    B = x.shape[0]
    bm_eff = _choose_bm(B, bm)
    n_blocks = pl.cdiv(B, bm_eff)

    def resident(shape):
        # Grid-invariant block: same block index every step, so the tile is
        # fetched once and stays VMEM-resident across the batch grid.
        return pl.BlockSpec(shape, lambda i: (0,) * len(shape))

    out = pl.pallas_call(
        mlp_kernel,
        out_shape=jax.ShapeDtypeStruct((B, OUTPUT_PAD), jnp.bfloat16),
        grid_spec=pltpu.PrefetchScalarGridSpec(
            num_scalar_prefetch=0,
            grid=(n_blocks,),
            in_specs=[
                pl.BlockSpec((bm_eff, INPUT_SIZE), lambda i: (i, 0)),   # x (f32)
                resident((INPUT_SIZE, H1)), resident((1, H1)),
                resident((H1, H2)), resident((1, H2)),
                resident((H2, H3)), resident((1, H3)),
                resident((H3, OUTPUT_PAD)), resident((1, OUTPUT_PAD)),
            ],
            out_specs=pl.BlockSpec((bm_eff, OUTPUT_PAD), lambda i: (i, 0)),
        ),
        compiler_params=pltpu.CompilerParams(
            dimension_semantics=("parallel",),
            vmem_limit_bytes=32 * 1024 * 1024,   # covers bm<=~1024 on v5e too
        ),
    )(x, w1p, b1p, w2p, b2p, w3p, b3p, w4p, b4p)

    # Slice the real 10 logits and return f32 (tiny op on B x 10 values).
    return out[:, :OUTPUT_SIZE].astype(jnp.float32)


def init_params(key):
    """Deterministic init mimicking PyTorch Linear default U[-1/sqrt(fan_in), +]."""
    dims = [INPUT_SIZE, H1, H2, H3, OUTPUT_SIZE]
    params = []
    for i in range(4):
        key, kw, kb = jax.random.split(key, 3)
        fan_in, fan_out = dims[i], dims[i + 1]
        bound = 1.0 / jnp.sqrt(fan_in)
        w = jax.random.uniform(kw, (fan_in, fan_out), jnp.float32, -bound, bound)
        b = jax.random.uniform(kb, (fan_out,), jnp.float32, -bound, bound)
        params.append((w, b))
    return params


def mlp_reference(x, params):
    """Same math as the kernel: bf16 operands, f32 accumulation, bf16 output."""
    h = x.astype(jnp.bfloat16)
    for i, (w, b) in enumerate(params):
        h = jnp.dot(h, w.astype(jnp.bfloat16),
                    preferred_element_type=jnp.float32) + b.reshape(1, -1)
        if i < 3:
            h = jnp.maximum(h, 0.0).astype(jnp.bfloat16)
    return h.astype(jnp.bfloat16).astype(jnp.float32)


if __name__ == "__main__":
    key = jax.random.PRNGKey(0)
    key, kx = jax.random.split(key)
    batch = 8
    x = jax.random.normal(kx, (batch, INPUT_SIZE), jnp.float32)
    params = init_params(key)

    prepped = prepare_params(params)          # one-time weight layout prep
    prepped = jax.block_until_ready(prepped)

    out = mlp_forward(x, prepped)
    out = jax.block_until_ready(out)

    ref = mlp_reference(x, params)
    assert out.shape == (batch, OUTPUT_SIZE)
    max_err = float(jnp.max(jnp.abs(out - ref)))
    assert jnp.allclose(out, ref, atol=2e-2, rtol=2e-2), max_err

    print("KERNEL_OK")
</pallas_src>

<mosaic_0001>
module attributes {stable_mosaic.version = 11 : i64} {
  func.func @mlp_kernel(%arg0: i32, %arg1: memref<8x784xf32, #tpu.memory_space<vmem>>, %arg2: memref<784x512xbf16, #tpu.memory_space<vmem>>, %arg3: memref<1x512xf32, #tpu.memory_space<vmem>>, %arg4: memref<512x256xbf16, #tpu.memory_space<vmem>>, %arg5: memref<1x256xf32, #tpu.memory_space<vmem>>, %arg6: memref<256x128xbf16, #tpu.memory_space<vmem>>, %arg7: memref<1x128xf32, #tpu.memory_space<vmem>>, %arg8: memref<128x128xbf16, #tpu.memory_space<vmem>>, %arg9: memref<1x128xf32, #tpu.memory_space<vmem>>, %arg10: memref<8x128xbf16, #tpu.memory_space<vmem>>) attributes {dimension_semantics = [#tpu.dimension_semantics<parallel>], iteration_bounds = array<i64: 1>, scalar_prefetch = 0 : i64, scratch_operands = 0 : i64, tpu.core_type = #tpu.core_type<tc>, window_params = [{transform_indices = @transform_0, window_bounds = array<i64: 8, 784>}, {pipeline_mode = #tpu.pipeline_mode<synchronous>, transform_indices = @transform_1, window_bounds = array<i64: 784, 512>}, {pipeline_mode = #tpu.pipeline_mode<synchronous>, transform_indices = @transform_2, window_bounds = array<i64: 1, 512>}, {pipeline_mode = #tpu.pipeline_mode<synchronous>, transform_indices = @transform_3, window_bounds = array<i64: 512, 256>}, {pipeline_mode = #tpu.pipeline_mode<synchronous>, transform_indices = @transform_4, window_bounds = array<i64: 1, 256>}, {pipeline_mode = #tpu.pipeline_mode<synchronous>, transform_indices = @transform_5, window_bounds = array<i64: 256, 128>}, {pipeline_mode = #tpu.pipeline_mode<synchronous>, transform_indices = @transform_6, window_bounds = array<i64: 1, 128>}, {pipeline_mode = #tpu.pipeline_mode<synchronous>, transform_indices = @transform_7, window_bounds = array<i64: 128, 128>}, {pipeline_mode = #tpu.pipeline_mode<synchronous>, transform_indices = @transform_8, window_bounds = array<i64: 1, 128>}, {transform_indices = @transform_9, window_bounds = array<i64: 8, 128>}]} {
    %c0 = arith.constant 0 : index
    %c0_0 = arith.constant 0 : index
    %0 = vector.load %arg1[%c0, %c0_0] : memref<8x784xf32, #tpu.memory_space<vmem>>, vector<8x784xf32>
    %1 = arith.truncf %0 : vector<8x784xf32> to vector<8x784xbf16>
    %c0_1 = arith.constant 0 : index
    %c0_2 = arith.constant 0 : index
    %2 = vector.load %arg2[%c0_1, %c0_2] : memref<784x512xbf16, #tpu.memory_space<vmem>>, vector<784x512xbf16>
    %cst = arith.constant dense<0.000000e+00> : vector<8x512xf32>
    %3 = tpu.matmul %1, %2, %cst {dimension_numbers = #tpu.dot_dimension_numbers<[1], [0], [0], [1], [0, 0, 1, 1], [], []>} : vector<8x784xbf16>, vector<784x512xbf16>, vector<8x512xf32> -> vector<8x512xf32>
    %c0_3 = arith.constant 0 : index
    %c0_4 = arith.constant 0 : index
    %4 = vector.load %arg3[%c0_3, %c0_4] : memref<1x512xf32, #tpu.memory_space<vmem>>, vector<1x512xf32>
    %5 = vector.broadcast %4 : vector<1x512xf32> to vector<8x512xf32>
    %6 = arith.addf %3, %5 : vector<8x512xf32>
    %cst_5 = arith.constant 0.000000e+00 : f32
    %7 = vector.broadcast %cst_5 : f32 to vector<8x512xf32>
    %8 = arith.maximumf %6, %7 : vector<8x512xf32>
    %9 = arith.truncf %8 : vector<8x512xf32> to vector<8x512xbf16>
    %c0_6 = arith.constant 0 : index
    %c0_7 = arith.constant 0 : index
    %10 = vector.load %arg4[%c0_6, %c0_7] : memref<512x256xbf16, #tpu.memory_space<vmem>>, vector<512x256xbf16>
    %cst_8 = arith.constant dense<0.000000e+00> : vector<8x256xf32>
    %11 = tpu.matmul %9, %10, %cst_8 {dimension_numbers = #tpu.dot_dimension_numbers<[1], [0], [0], [1], [0, 0, 1, 1], [], []>} : vector<8x512xbf16>, vector<512x256xbf16>, vector<8x256xf32> -> vector<8x256xf32>
    %c0_9 = arith.constant 0 : index
    %c0_10 = arith.constant 0 : index
    %12 = vector.load %arg5[%c0_9, %c0_10] : memref<1x256xf32, #tpu.memory_space<vmem>>, vector<1x256xf32>
    %13 = vector.broadcast %12 : vector<1x256xf32> to vector<8x256xf32>
    %14 = arith.addf %11, %13 : vector<8x256xf32>
    %cst_11 = arith.constant 0.000000e+00 : f32
    %15 = vector.broadcast %cst_11 : f32 to vector<8x256xf32>
    %16 = arith.maximumf %14, %15 : vector<8x256xf32>
    %17 = arith.truncf %16 : vector<8x256xf32> to vector<8x256xbf16>
    %c0_12 = arith.constant 0 : index
    %c0_13 = arith.constant 0 : index
    %18 = vector.load %arg6[%c0_12, %c0_13] : memref<256x128xbf16, #tpu.memory_space<vmem>>, vector<256x128xbf16>
    %cst_14 = arith.constant dense<0.000000e+00> : vector<8x128xf32>
    %19 = tpu.matmul %17, %18, %cst_14 {dimension_numbers = #tpu.dot_dimension_numbers<[1], [0], [0], [1], [0, 0, 1, 1], [], []>} : vector<8x256xbf16>, vector<256x128xbf16>, vector<8x128xf32> -> vector<8x128xf32>
    %c0_15 = arith.constant 0 : index
    %c0_16 = arith.constant 0 : index
    %20 = vector.load %arg7[%c0_15, %c0_16] : memref<1x128xf32, #tpu.memory_space<vmem>>, vector<1x128xf32>
    %21 = vector.broadcast %20 : vector<1x128xf32> to vector<8x128xf32>
    %22 = arith.addf %19, %21 : vector<8x128xf32>
    %cst_17 = arith.constant 0.000000e+00 : f32
    %23 = vector.broadcast %cst_17 : f32 to vector<8x128xf32>
    %24 = arith.maximumf %22, %23 : vector<8x128xf32>
    %25 = arith.truncf %24 : vector<8x128xf32> to vector<8x128xbf16>
    %c0_18 = arith.constant 0 : index
    %c0_19 = arith.constant 0 : index
    %26 = vector.load %arg8[%c0_18, %c0_19] : memref<128x128xbf16, #tpu.memory_space<vmem>>, vector<128x128xbf16>
    %cst_20 = arith.constant dense<0.000000e+00> : vector<8x128xf32>
    %27 = tpu.matmul %25, %26, %cst_20 {dimension_numbers = #tpu.dot_dimension_numbers<[1], [0], [0], [1], [0, 0, 1, 1], [], []>} : vector<8x128xbf16>, vector<128x128xbf16>, vector<8x128xf32> -> vector<8x128xf32>
    %c0_21 = arith.constant 0 : index
    %c0_22 = arith.constant 0 : index
    %28 = vector.load %arg9[%c0_21, %c0_22] : memref<1x128xf32, #tpu.memory_space<vmem>>, vector<1x128xf32>
    %29 = vector.broadcast %28 : vector<1x128xf32> to vector<8x128xf32>
    %30 = arith.addf %27, %29 : vector<8x128xf32>
    %31 = arith.truncf %30 : vector<8x128xf32> to vector<8x128xbf16>
    %c0_23 = arith.constant 0 : index
    %c0_24 = arith.constant 0 : index
    %32 = vector.load %arg10[%c0_23, %c0_24] : memref<8x128xbf16, #tpu.memory_space<vmem>>, vector<8x128xbf16>
    tpu.vector_store %arg10[%c0_23, %c0_24], %31 {strides = array<i32>} : memref<8x128xbf16, #tpu.memory_space<vmem>>, vector<8x128xbf16>,
    return
  }
  func.func @transform_0(%arg0: i32) -> (i32, i32) {
    %c0_i32 = arith.constant 0 : i32
    %c0_i32_0 = arith.constant 0 : i32
    return %arg0, %c0_i32 : i32, i32
  }
  func.func @transform_1(%arg0: i32) -> (i32, i32) {
    %c0_i32 = arith.constant 0 : i32
    %c0_i32_0 = arith.constant 0 : i32
    %c0_i32_1 = arith.constant 0 : i32
    return %c0_i32, %c0_i32_0 : i32, i32
  }
  func.func @transform_2(%arg0: i32) -> (i32, i32) {
    %c0_i32 = arith.constant 0 : i32
    %c0_i32_0 = arith.constant 0 : i32
    %c0_i32_1 = arith.constant 0 : i32
    return %c0_i32, %c0_i32_0 : i32, i32
  }
  func.func @transform_3(%arg0: i32) -> (i32, i32) {
    %c0_i32 = arith.constant 0 : i32
    %c0_i32_0 = arith.constant 0 : i32
    %c0_i32_1 = arith.constant 0 : i32
    return %c0_i32, %c0_i32_0 : i32, i32
  }
  func.func @transform_4(%arg0: i32) -> (i32, i32) {
    %c0_i32 = arith.constant 0 : i32
    %c0_i32_0 = arith.constant 0 : i32
    %c0_i32_1 = arith.constant 0 : i32
    return %c0_i32, %c0_i32_0 : i32, i32
  }
  func.func @transform_5(%arg0: i32) -> (i32, i32) {
    %c0_i32 = arith.constant 0 : i32
    %c0_i32_0 = arith.constant 0 : i32
    %c0_i32_1 = arith.constant 0 : i32
    return %c0_i32, %c0_i32_0 : i32, i32
  }
  func.func @transform_6(%arg0: i32) -> (i32, i32) {
    %c0_i32 = arith.constant 0 : i32
    %c0_i32_0 = arith.constant 0 : i32
    %c0_i32_1 = arith.constant 0 : i32
    return %c0_i32, %c0_i32_0 : i32, i32
  }
  func.func @transform_7(%arg0: i32) -> (i32, i32) {
    %c0_i32 = arith.constant 0 : i32
    %c0_i32_0 = arith.constant 0 : i32
    %c0_i32_1 = arith.constant 0 : i32
    return %c0_i32, %c0_i32_0 : i32, i32
  }
  func.func @transform_8(%arg0: i32) -> (i32, i32) {
    %c0_i32 = arith.constant 0 : i32
    %c0_i32_0 = arith.constant 0 : i32
    %c0_i32_1 = arith.constant 0 : i32
    return %c0_i32, %c0_i32_0 : i32, i32
  }
  func.func @transform_9(%arg0: i32) -> (i32, i32) {
    %c0_i32 = arith.constant 0 : i32
    %c0_i32_0 = arith.constant 0 : i32
    return %arg0, %c0_i32 : i32, i32
  }
}

</mosaic_0001>

<llo_original>
// kernel: mlp_forward.1
$region0: #{mlp_forward.1}
  #allocation0 [shape = 'u32[]', space=smem, size = 0x4, offset = 0x4, fixed_abs, tag = 'smem constant byte address 0x4 - core index']
  #allocation1 [shape = 'u32[144,128]{1,0:T(1,128)}', space=vmem, size = 0x12000, scoped, tag = 'internal scratch']
  %s0 = inlined_call_operand.hbm [shape: f32[8,784], index: 0, kind: input, shape index: {}]
  %s1 = inlined_call_operand.hbm [shape: bf16[784,512], index: 1, kind: input, shape index: {}]
  %s2 = inlined_call_operand.vmem [shape: f32[1,512], index: 2, kind: input, shape index: {}]
  %s3 = inlined_call_operand.hbm [shape: bf16[512,256], index: 3, kind: input, shape index: {}]
  %s4 = inlined_call_operand.vmem [shape: f32[1,256], index: 4, kind: input, shape index: {}]
  %s5 = inlined_call_operand.hbm [shape: bf16[256,128], index: 5, kind: input, shape index: {}]
  %s6 = inlined_call_operand.vmem [shape: f32[1,128], index: 6, kind: input, shape index: {}]
  %s7 = inlined_call_operand.hbm [shape: bf16[128,128], index: 7, kind: input, shape index: {}]
  %s8 = inlined_call_operand.vmem [shape: f32[1,128], index: 8, kind: input, shape index: {}]
  %s9 = inlined_call_operand.vmem [shape: bf16[8,128], index: 9, kind: output, shape index: {}]
  %s10 = sld [smem:[#allocation0]]
  $region66: #{mlp_forward.1} parent=0
    _
  %s12 = ssub.s32 1, %s10
  %s13 = scalar_select 0, %s12, %s10
  $region1: #{mlp_forward.1} parent=0
    #allocation2 [shape = 'u8[28672]{0}', space=vmem, size = 0x7000, scoped, tag = 'input window, operand 0, single buffered']
    #allocation3 [shape = 's32[1]{0}', space=sflag, size = 0x4, scoped, tag = 'scoped memory for mlp_forward.1']
    #allocation4 [shape = 'u8[802816]{0}', space=vmem, size = 0xc4000, scoped, tag = 'input window, operand 1, single buffered']
    #allocation5 [shape = 's32[1]{0}', space=sflag, size = 0x4, scoped, tag = 'scoped memory for mlp_forward.1']
    #allocation6 [shape = 'u8[262144]{0}', space=vmem, size = 0x40000, scoped, tag = 'input window, operand 3, single buffered']
    #allocation7 [shape = 'u8[65536]{0}', space=vmem, size = 0x10000, scoped, tag = 'input window, operand 5, single buffered']
    #allocation8 [shape = 's32[1]{0}', space=sflag, size = 0x4, scoped, tag = 'scoped memory for mlp_forward.1']
    #allocation9 [shape = 'u8[32768]{0}', space=vmem, size = 0x8000, scoped, tag = 'input window, operand 7, single buffered']
    %14 = vsyncpa [#allocation3], 0
    %15 = vsyncpa [#allocation5], 0
    %16 = vsyncpa [#allocation8], 0
    // Predicated region
    $region2: #{mlp_forward.1} parent=1 // pred_check
      _
    $region3: #{mlp_forward.1} parent=1 // pred_check_branch
      %18 = sbr.rel (0) target = $region5
    $region4: #{mlp_forward.1} parent=1 // pred_region
      %s20 = ssub.s32 896, 896
      %21 = vsyncadd [#allocation3], %s20
      %s23 = sshll.u32 [#allocation2], 4
      %s24 = int_to_ptr.vmem [resolvable:$true] %s23
      %26 = dma.hbm_to_vmem [thread:$0]  %s0, 896, %s24, [#allocation3]
    $region5: #{mlp_forward.1} parent=1 // pred_fallthru
      _
    // Predicated region
    $region6: #{mlp_forward.1} parent=1 // pred_check
      _
    $region7: #{mlp_forward.1} parent=1 // pred_check_branch
      %28 = sbr.rel (0) target = $region9
    $region8: #{mlp_forward.1} parent=1 // pred_region
      %s30 = ssub.s32 25088, 25088
      %31 = vsyncadd [#allocation5], %s30
      %s32 = sshll.u32 [#allocation4], 4
      %s33 = int_to_ptr.vmem [resolvable:$true] %s32
      %38 = dma.hbm_to_vmem [thread:$0]  %s1, 25088, %s33, [#allocation5], 256, 256, 16
    $region9: #{mlp_forward.1} parent=1 // pred_fallthru
      _
    // Predicated region
    $region10: #{mlp_forward.1} parent=1 // pred_check
      _
    $region11: #{mlp_forward.1} parent=1 // pred_check_branch
      %40 = sbr.rel (0) target = $region13
    $region12: #{mlp_forward.1} parent=1 // pred_region
      _
    $region13: #{mlp_forward.1} parent=1 // pred_fallthru
      _
    // Predicated region
    $region14: #{mlp_forward.1} parent=1 // pred_check
      _
    $region15: #{mlp_forward.1} parent=1 // pred_check_branch
      %42 = sbr.rel (0) target = $region17
    $region16: #{mlp_forward.1} parent=1 // pred_region
      %s44 = ssub.s32 8192, 8192
      %45 = vsyncadd [#allocation5], %s44
      %s46 = sshll.u32 [#allocation6], 4
      %s47 = int_to_ptr.vmem [resolvable:$true] %s46
      %52 = dma.hbm_to_vmem [thread:$0]  %s3, 8192, %s47, [#allocation5], 128, 128, 8
    $region17: #{mlp_forward.1} parent=1 // pred_fallthru
      _
    // Predicated region
    $region18: #{mlp_forward.1} parent=1 // pred_check
      _
    $region19: #{mlp_forward.1} parent=1 // pred_check_branch
      %54 = sbr.rel (0) target = $region21
    $region20: #{mlp_forward.1} parent=1 // pred_region
      _
    $region21: #{mlp_forward.1} parent=1 // pred_fallthru
      _
    // Predicated region
    $region22: #{mlp_forward.1} parent=1 // pred_check
      _
    $region23: #{mlp_forward.1} parent=1 // pred_check_branch
      %56 = sbr.rel (0) target = $region25
    $region24: #{mlp_forward.1} parent=1 // pred_region
      %s58 = ssub.s32 2048, 2048
      %59 = vsyncadd [#allocation8], %s58
      %s60 = sshll.u32 [#allocation7], 4
      %s61 = int_to_ptr.vmem [resolvable:$true] %s60
      %66 = dma.hbm_to_vmem [thread:$0]  %s5, 2048, %s61, [#allocation8], 64, 64, 4
    $region25: #{mlp_forward.1} parent=1 // pred_fallthru
      _
    // Predicated region
    $region26: #{mlp_forward.1} parent=1 // pred_check
      _
    $region27: #{mlp_forward.1} parent=1 // pred_check_branch
      %68 = sbr.rel (0) target = $region29
    $region28: #{mlp_forward.1} parent=1 // pred_region
      _
    $region29: #{mlp_forward.1} parent=1 // pred_fallthru
      _
    // Predicated region
    $region30: #{mlp_forward.1} parent=1 // pred_check
      _
    $region31: #{mlp_forward.1} parent=1 // pred_check_branch
      %70 = sbr.rel (0) target = $region33
    $region32: #{mlp_forward.1} parent=1 // pred_region
      %s72 = ssub.s32 1024, 1024
      %73 = vsyncadd [#allocation8], %s72
      %s74 = sshll.u32 [#allocation9], 4
      %s75 = int_to_ptr.vmem [resolvable:$true] %s74
      %80 = dma.hbm_to_vmem [thread:$0]  %s7, 1024, %s75, [#allocation8], 64, 64, 4
    $region33: #{mlp_forward.1} parent=1 // pred_fallthru
      _
    // Predicated region
    $region34: #{mlp_forward.1} parent=1 // pred_check
      _
    $region35: #{mlp_forward.1} parent=1 // pred_check_branch
      %82 = sbr.rel (0) target = $region37
    $region36: #{mlp_forward.1} parent=1 // pred_region
      _
    $region37: #{mlp_forward.1} parent=1 // pred_fallthru
      _
    // Predicated region
    $region38: #{mlp_forward.1} parent=1 // pred_check
      _
    $region39: #{mlp_forward.1} parent=1 // pred_check_branch
      %84 = sbr.rel (0) target = $region41
    $region40: #{mlp_forward.1} parent=1 // pred_region
      %85 = dma.done [#allocation3], 896
    $region41: #{mlp_forward.1} parent=1 // pred_fallthru
      _
    // Predicated region
    $region42: #{mlp_forward.1} parent=1 // pred_check
      _
    $region43: #{mlp_forward.1} parent=1 // pred_check_branch
      %87 = sbr.rel (0) target = $region45
    $region44: #{mlp_forward.1} parent=1 // pred_region
      %88 = dma.done [#allocation5], 25088
    $region45: #{mlp_forward.1} parent=1 // pred_fallthru
      _
    // Predicated region
    $region46: #{mlp_forward.1} parent=1 // pred_check
      _
    $region47: #{mlp_forward.1} parent=1 // pred_check_branch
      %90 = sbr.rel (0) target = $region49
    $region48: #{mlp_forward.1} parent=1 // pred_region
      %91 = dma.done [#allocation5], 8192
    $region49: #{mlp_forward.1} parent=1 // pred_fallthru
      _
    // Predicated region
    $region50: #{mlp_forward.1} parent=1 // pred_check
      _
    $region51: #{mlp_forward.1} parent=1 // pred_check_branch
      %93 = sbr.rel (0) target = $region53
    $region52: #{mlp_forward.1} parent=1 // pred_region
      %94 = dma.done [#allocation8], 2048
    $region53: #{mlp_forward.1} parent=1 // pred_fallthru
      _
    // Predicated region
    $region54: #{mlp_forward.1} parent=1 // pred_check
      _
    $region55: #{mlp_forward.1} parent=1 // pred_check_branch
      %96 = sbr.rel (0) target = $region57
    $region56: #{mlp_forward.1} parent=1 // pred_region
      %97 = dma.done [#allocation8], 1024
    $region57: #{mlp_forward.1} parent=1 // pred_fallthru
      _
    %v99 = vld [vmem:[#allocation2] sm:$0xff]
    %v100 = vld [vmem:[#allocation2 + $0x8] sm:$0xff]
    %v101 = vld [vmem:[#allocation2 + $0x10] sm:$0xff]
    %v102 = vld [vmem:[#allocation2 + $0x18] sm:$0xff]
    %v103 = vld [vmem:[#allocation2 + $0x20] sm:$0xff]
    %v104 = vld [vmem:[#allocation2 + $0x28] sm:$0xff]
    %v105 = vld [vmem:[#allocation2 + $0x30] sm:$0xff]
    %v106 = vpack.c.bf16 %v99, %v99
    %v107 = vpack.c.bf16 %v100, %v100
    %v108 = vpack.c.bf16 %v101, %v101
    %v109 = vpack.c.bf16 %v102, %v102
    %v110 = vpack.c.bf16 %v103, %v103
    %v111 = vpack.c.bf16 %v104, %v104
    %v112 = vpack.c.bf16 %v105, %v105
    %v113 = vld [vmem:[#allocation4] sm:$0xff]
    %v114 = vld [vmem:[#allocation4 + $0x8] sm:$0xff]
    %v115 = vld [vmem:[#allocation4 + $0x10] sm:$0xff]
    %v116 = vld [vmem:[#allocation4 + $0x18] sm:$0xff]
    %v117 = vld [vmem:[#allocation4 + $0x20] sm:$0xff]
    %v118 = vld [vmem:[#allocation4 + $0x28] sm:$0xff]
    %v119 = vld [vmem:[#allocation4 + $0x30] sm:$0xff]
    %v120 = vld [vmem:[#allocation4 + $0x38] sm:$0xff]
    %v121 = vld [vmem:[#allocation4 + $0x40] sm:$0xff]
    %v122 = vld [vmem:[#allocation4 + $0x48] sm:$0xff]
    %v123 = vld [vmem:[#allocation4 + $0x50] sm:$0xff]
    %v124 = vld [vmem:[#allocation4 + $0x58] sm:$0xff]
    %v125 = vld [vmem:[#allocation4 + $0x60] sm:$0xff]
    %v126 = vld [vmem:[#allocation4 + $0x68] sm:$0xff]
    %v127 = vld [vmem:[#allocation4 + $0x70] sm:$0xff]
    %v128 = vld [vmem:[#allocation4 + $0x78] sm:$0xff]
    %v129 = vld [vmem:[#allocation4 + $0x80] sm:$0xff]
    %v130 = vld [vmem:[#allocation4 + $0x88] sm:$0xff]
    %v131 = vld [vmem:[#allocation4 + $0x90] sm:$0xff]
    %v132 = vld [vmem:[#allocation4 + $0x98] sm:$0xff]
    %v133 = vld [vmem:[#allocation4 + $0xa0] sm:$0xff]
    %v134 = vld [vmem:[#allocation4 + $0xa8] sm:$0xff]
    %v135 = vld [vmem:[#allocation4 + $0xb0] sm:$0xff]
    %v136 = vld [vmem:[#allocation4 + $0xb8] sm:$0xff]
    %v137 = vld [vmem:[#allocation4 + $0xc0] sm:$0xff]
    %v138 = vld [vmem:[#allocation4 + $0xc8] sm:$0xff]
    %v139 = vld [vmem:[#allocation4 + $0xd0] sm:$0xff]
    %v140 = vld [vmem:[#allocation4 + $0xd8] sm:$0xff]
    %v141 = vld [vmem:[#allocation4 + $0xe0] sm:$0xff]
    %v142 = vld [vmem:[#allocation4 + $0xe8] sm:$0xff]
    %v143 = vld [vmem:[#allocation4 + $0xf0] sm:$0xff]
    %v144 = vld [vmem:[#allocation4 + $0xf8] sm:$0xff]
    %v145 = vld [vmem:[#allocation4 + $0x100] sm:$0xff]
    %v146 = vld [vmem:[#allocation4 + $0x108] sm:$0xff]
    %v147 = vld [vmem:[#allocation4 + $0x110] sm:$0xff]
    %v148 = vld [vmem:[#allocation4 + $0x118] sm:$0xff]
    %v149 = vld [vmem:[#allocation4 + $0x120] sm:$0xff]
    %v150 = vld [vmem:[#allocation4 + $0x128] sm:$0xff]
    %v151 = vld [vmem:[#allocation4 + $0x130] sm:$0xff]
    %v152 = vld [vmem:[#allocation4 + $0x138] sm:$0xff]
    %v153 = vld [vmem:[#allocation4 + $0x140] sm:$0xff]
    %v154 = vld [vmem:[#allocation4 + $0x148] sm:$0xff]
    %v155 = vld [vmem:[#allocation4 + $0x150] sm:$0xff]
    %v156 = vld [vmem:[#allocation4 + $0x158] sm:$0xff]
    %v157 = vld [vmem:[#allocation4 + $0x160] sm:$0xff]
    %v158 = vld [vmem:[#allocation4 + $0x168] sm:$0xff]
    %v159 = vld [vmem:[#allocation4 + $0x170] sm:$0xff]
    %v160 = vld [vmem:[#allocation4 + $0x178] sm:$0xff]
    %v161 = vld [vmem:[#allocation4 + $0x180] sm:$0xff]
    %v162 = vld [vmem:[#allocation4 + $0x188] sm:$0xff]
    %v163 = vld [vmem:[#allocation4 + $0x190] sm:$0xff]
    %v164 = vld [vmem:[#allocation4 + $0x198] sm:$0xff]
    %v165 = vld [vmem:[#allocation4 + $0x1a0] sm:$0xff]
    %v166 = vld [vmem:[#allocation4 + $0x1a8] sm:$0xff]
    %v167 = vld [vmem:[#allocation4 + $0x1b0] sm:$0xff]
    %v168 = vld [vmem:[#allocation4 + $0x1b8] sm:$0xff]
    %v169 = vld [vmem:[#allocation4 + $0x1c0] sm:$0xff]
    %v170 = vld [vmem:[#allocation4 + $0x1c8] sm:$0xff]
    %v171 = vld [vmem:[#allocation4 + $0x1d0] sm:$0xff]
    %v172 = vld [vmem:[#allocation4 + $0x1d8] sm:$0xff]
    %v173 = vld [vmem:[#allocation4 + $0x1e0] sm:$0xff]
    %v174 = vld [vmem:[#allocation4 + $0x1e8] sm:$0xff]
    %v175 = vld [vmem:[#allocation4 + $0x1f0] sm:$0xff]
    %v176 = vld [vmem:[#allocation4 + $0x1f8] sm:$0xff]
    %v177 = vld [vmem:[#allocation4 + $0x200] sm:$0xff]
    %v178 = vld [vmem:[#allocation4 + $0x208] sm:$0xff]
    %v179 = vld [vmem:[#allocation4 + $0x210] sm:$0xff]
    %v180 = vld [vmem:[#allocation4 + $0x218] sm:$0xff]
    %v181 = vld [vmem:[#allocation4 + $0x220] sm:$0xff]
    %v182 = vld [vmem:[#allocation4 + $0x228] sm:$0xff]
    %v183 = vld [vmem:[#allocation4 + $0x230] sm:$0xff]
    %v184 = vld [vmem:[#allocation4 + $0x238] sm:$0xff]
    %v185 = vld [vmem:[#allocation4 + $0x240] sm:$0xff]
    %v186 = vld [vmem:[#allocation4 + $0x248] sm:$0xff]
    %v187 = vld [vmem:[#allocation4 + $0x250] sm:$0xff]
    %v188 = vld [vmem:[#allocation4 + $0x258] sm:$0xff]
    %v189 = vld [vmem:[#allocation4 + $0x260] sm:$0xff]
    %v190 = vld [vmem:[#allocation4 + $0x268] sm:$0xff]
    %v191 = vld [vmem:[#allocation4 + $0x270] sm:$0xff]
    %v192 = vld [vmem:[#allocation4 + $0x278] sm:$0xff]
    %v193 = vld [vmem:[#allocation4 + $0x280] sm:$0xff]
    %v194 = vld [vmem:[#allocation4 + $0x288] sm:$0xff]
    %v195 = vld [vmem:[#allocation4 + $0x290] sm:$0xff]
    %v196 = vld [vmem:[#allocation4 + $0x298] sm:$0xff]
    %v197 = vld [vmem:[#allocation4 + $0x2a0] sm:$0xff]
    %v198 = vld [vmem:[#allocation4 + $0x2a8] sm:$0xff]
    %v199 = vld [vmem:[#allocation4 + $0x2b0] sm:$0xff]
    %v200 = vld [vmem:[#allocation4 + $0x2b8] sm:$0xff]
    %v201 = vld [vmem:[#allocation4 + $0x2c0] sm:$0xff]
    %v202 = vld [vmem:[#allocation4 + $0x2c8] sm:$0xff]
    %v203 = vld [vmem:[#allocation4 + $0x2d0] sm:$0xff]
    %v204 = vld [vmem:[#allocation4 + $0x2d8] sm:$0xff]
    %v205 = vld [vmem:[#allocation4 + $0x2e0] sm:$0xff]
    %v206 = vld [vmem:[#allocation4 + $0x2e8] sm:$0xff]
    %v207 = vld [vmem:[#allocation4 + $0x2f0] sm:$0xff]
    %v208 = vld [vmem:[#allocation4 + $0x2f8] sm:$0xff]
    %v209 = vld [vmem:[#allocation4 + $0x300] sm:$0xff]
    %v210 = vld [vmem:[#allocation4 + $0x308] sm:$0xff]
    %v211 = vld [vmem:[#allocation4 + $0x310] sm:$0xff]
    %v212 = vld [vmem:[#allocation4 + $0x318] sm:$0xff]
    %v213 = vld [vmem:[#allocation4 + $0x320] sm:$0xff]
    %v214 = vld [vmem:[#allocation4 + $0x328] sm:$0xff]
    %v215 = vld [vmem:[#allocation4 + $0x330] sm:$0xff]
    %v216 = vld [vmem:[#allocation4 + $0x338] sm:$0xff]
    %v217 = vld [vmem:[#allocation4 + $0x340] sm:$0xff]
    %v218 = vld [vmem:[#allocation4 + $0x348] sm:$0xff]
    %v219 = vld [vmem:[#allocation4 + $0x350] sm:$0xff]
    %v220 = vld [vmem:[#allocation4 + $0x358] sm:$0xff]
    %v221 = vld [vmem:[#allocation4 + $0x360] sm:$0xff]
    %v222 = vld [vmem:[#allocation4 + $0x368] sm:$0xff]
    %v223 = vld [vmem:[#allocation4 + $0x370] sm:$0xff]
    %v224 = vld [vmem:[#allocation4 + $0x378] sm:$0xff]
    %v225 = vld [vmem:[#allocation4 + $0x380] sm:$0xff]
    %v226 = vld [vmem:[#allocation4 + $0x388] sm:$0xff]
    %v227 = vld [vmem:[#allocation4 + $0x390] sm:$0xff]
    %v228 = vld [vmem:[#allocation4 + $0x398] sm:$0xff]
    %v229 = vld [vmem:[#allocation4 + $0x3a0] sm:$0xff]
    %v230 = vld [vmem:[#allocation4 + $0x3a8] sm:$0xff]
    %v231 = vld [vmem:[#allocation4 + $0x3b0] sm:$0xff]
    %v232 = vld [vmem:[#allocation4 + $0x3b8] sm:$0xff]
    %v233 = vld [vmem:[#allocation4 + $0x3c0] sm:$0xff]
    %v234 = vld [vmem:[#allocation4 + $0x3c8] sm:$0xff]
    %v235 = vld [vmem:[#allocation4 + $0x3d0] sm:$0xff]
    %v236 = vld [vmem:[#allocation4 + $0x3d8] sm:$0xff]
    %v237 = vld [vmem:[#allocation4 + $0x3e0] sm:$0xff]
    %v238 = vld [vmem:[#allocation4 + $0x3e8] sm:$0xff]
    %v239 = vld [vmem:[#allocation4 + $0x3f0] sm:$0xff]
    %v240 = vld [vmem:[#allocation4 + $0x3f8] sm:$0xff]
    %v241 = vld [vmem:[#allocation4 + $0x400] sm:$0xff]
    %v242 = vld [vmem:[#allocation4 + $0x408] sm:$0xff]
    %v243 = vld [vmem:[#allocation4 + $0x410] sm:$0xff]
    %v244 = vld [vmem:[#allocation4 + $0x418] sm:$0xff]
    %v245 = vld [vmem:[#allocation4 + $0x420] sm:$0xff]
    %v246 = vld [vmem:[#allocation4 + $0x428] sm:$0xff]
    %v247 = vld [vmem:[#allocation4 + $0x430] sm:$0xff]
    %v248 = vld [vmem:[#allocation4 + $0x438] sm:$0xff]
    %v249 = vld [vmem:[#allocation4 + $0x440] sm:$0xff]
    %v250 = vld [vmem:[#allocation4 + $0x448] sm:$0xff]
    %v251 = vld [vmem:[#allocation4 + $0x450] sm:$0xff]
    %v252 = vld [vmem:[#allocation4 + $0x458] sm:$0xff]
    %v253 = vld [vmem:[#allocation4 + $0x460] sm:$0xff]
    %v254 = vld [vmem:[#allocation4 + $0x468] sm:$0xff]
    %v255 = vld [vmem:[#allocation4 + $0x470] sm:$0xff]
    %v256 = vld [vmem:[#allocation4 + $0x478] sm:$0xff]
    %v257 = vld [vmem:[#allocation4 + $0x480] sm:$0xff]
    %v258 = vld [vmem:[#allocation4 + $0x488] sm:$0xff]
    %v259 = vld [vmem:[#allocation4 + $0x490] sm:$0xff]
    %v260 = vld [vmem:[#allocation4 + $0x498] sm:$0xff]
    %v261 = vld [vmem:[#allocation4 + $0x4a0] sm:$0xff]
    %v262 = vld [vmem:[#allocation4 + $0x4a8] sm:$0xff]
    %v263 = vld [vmem:[#allocation4 + $0x4b0] sm:$0xff]
    %v264 = vld [vmem:[#allocation4 + $0x4b8] sm:$0xff]
    %v265 = vld [vmem:[#allocation4 + $0x4c0] sm:$0xff]
    %v266 = vld [vmem:[#allocation4 + $0x4c8] sm:$0xff]
    %v267 = vld [vmem:[#allocation4 + $0x4d0] sm:$0xff]
    %v268 = vld [vmem:[#allocation4 + $0x4d8] sm:$0xff]
    %v269 = vld [vmem:[#allocation4 + $0x4e0] sm:$0xff]
    %v270 = vld [vmem:[#allocation4 + $0x4e8] sm:$0xff]
    %v271 = vld [vmem:[#allocation4 + $0x4f0] sm:$0xff]
    %v272 = vld [vmem:[#allocation4 + $0x4f8] sm:$0xff]
    %v273 = vld [vmem:[#allocation4 + $0x500] sm:$0xff]
    %v274 = vld [vmem:[#allocation4 + $0x508] sm:$0xff]
    %v275 = vld [vmem:[#allocation4 + $0x510] sm:$0xff]
    %v276 = vld [vmem:[#allocation4 + $0x518] sm:$0xff]
    %v277 = vld [vmem:[#allocation4 + $0x520] sm:$0xff]
    %v278 = vld [vmem:[#allocation4 + $0x528] sm:$0xff]
    %v279 = vld [vmem:[#allocation4 + $0x530] sm:$0xff]
    %v280 = vld [vmem:[#allocation4 + $0x538] sm:$0xff]
    %v281 = vld [vmem:[#allocation4 + $0x540] sm:$0xff]
    %v282 = vld [vmem:[#allocation4 + $0x548] sm:$0xff]
    %v283 = vld [vmem:[#allocation4 + $0x550] sm:$0xff]
    %v284 = vld [vmem:[#allocation4 + $0x558] sm:$0xff]
    %v285 = vld [vmem:[#allocation4 + $0x560] sm:$0xff]
    %v286 = vld [vmem:[#allocation4 + $0x568] sm:$0xff]
    %v287 = vld [vmem:[#allocation4 + $0x570] sm:$0xff]
    %v288 = vld [vmem:[#allocation4 + $0x578] sm:$0xff]
    %v289 = vld [vmem:[#allocation4 + $0x580] sm:$0xff]
    %v290 = vld [vmem:[#allocation4 + $0x588] sm:$0xff]
    %v291 = vld [vmem:[#allocation4 + $0x590] sm:$0xff]
    %v292 = vld [vmem:[#allocation4 + $0x598] sm:$0xff]
    %v293 = vld [vmem:[#allocation4 + $0x5a0] sm:$0xff]
    %v294 = vld [vmem:[#allocation4 + $0x5a8] sm:$0xff]
    %v295 = vld [vmem:[#allocation4 + $0x5b0] sm:$0xff]
    %v296 = vld [vmem:[#allocation4 + $0x5b8] sm:$0xff]
    %v297 = vld [vmem:[#allocation4 + $0x5c0] sm:$0xff]
    %v298 = vld [vmem:[#allocation4 + $0x5c8] sm:$0xff]
    %v299 = vld [vmem:[#allocation4 + $0x5d0] sm:$0xff]
    %v300 = vld [vmem:[#allocation4 + $0x5d8] sm:$0xff]
    %v301 = vld [vmem:[#allocation4 + $0x5e0] sm:$0xff]
    %v302 = vld [vmem:[#allocation4 + $0x5e8] sm:$0xff]
    %v303 = vld [vmem:[#allocation4 + $0x5f0] sm:$0xff]
    %v304 = vld [vmem:[#allocation4 + $0x5f8] sm:$0xff]
    %v305 = vld [vmem:[#allocation4 + $0x600] sm:$0xff]
    %v306 = vld [vmem:[#allocation4 + $0x608] sm:$0xff]
    %v307 = vld [vmem:[#allocation4 + $0x610] sm:$0xff]
    %v308 = vld [vmem:[#allocation4 + $0x618] sm:$0xff]
    %v309 = vld [vmem:[%s2] sm:$0xf]
    %v311 = vlaneseq
    %v312 = vshrl.u32 %v311, 7
    %v313 = vsub.s32 0, %v312
    %v314 = vrot.slane %v309, %v313
    %v315 = vlaneseq
    %v316 = vshrl.u32 %v315, 7
    %v317 = vsub.s32 1, %v316
    %v318 = vrot.slane %v309, %v317
    %v319 = vlaneseq
    %v320 = vshrl.u32 %v319, 7
    %v321 = vsub.s32 2, %v320
    %v322 = vrot.slane %v309, %v321
    %v323 = vlaneseq
    %v324 = vshrl.u32 %v323, 7
    %v325 = vsub.s32 3, %v324
    %v326 = vrot.slane %v309, %v325
    %v527 = vunpack.c.l.b16 %v113
    %v528 = vunpack.c.h.b16 %v113
    %v529 = vunpack.c.l.b16 %v114
    %v530 = vunpack.c.h.b16 %v114
    %v531 = vunpack.c.l.b16 %v115
    %v532 = vunpack.c.h.b16 %v115
    %v533 = vunpack.c.l.b16 %v116
    %v534 = vunpack.c.h.b16 %v116
    %v535 = vunpack.c.l.b16 %v117
    %v536 = vunpack.c.h.b16 %v117
    %v537 = vunpack.c.l.b16 %v118
    %v538 = vunpack.c.h.b16 %v118
    %v539 = vunpack.c.l.b16 %v119
    %v540 = vunpack.c.h.b16 %v119
    %v541 = vunpack.c.l.b16 %v120
    %v542 = vunpack.c.h.b16 %v120
    %v543 = vunpack.c.l.b16 %v121
    %v544 = vunpack.c.h.b16 %v121
    %v545 = vunpack.c.l.b16 %v122
    %v546 = vunpack.c.h.b16 %v122
    %v547 = vunpack.c.l.b16 %v123
    %v548 = vunpack.c.h.b16 %v123
    %v549 = vunpack.c.l.b16 %v124
    %v550 = vunpack.c.h.b16 %v124
    %v551 = vunpack.c.l.b16 %v125
    %v552 = vunpack.c.h.b16 %v125
    %v553 = vunpack.c.l.b16 %v126
    %v554 = vunpack.c.h.b16 %v126
    %v555 = vunpack.c.l.b16 %v127
    %v556 = vunpack.c.h.b16 %v127
    %v557 = vunpack.c.l.b16 %v128
    %v558 = vunpack.c.h.b16 %v128
    %v559 = vunpack.c.l.b16 %v129
    %v560 = vunpack.c.h.b16 %v129
    %v561 = vunpack.c.l.b16 %v130
    %v562 = vunpack.c.h.b16 %v130
    %v563 = vunpack.c.l.b16 %v131
    %v564 = vunpack.c.h.b16 %v131
    %v565 = vunpack.c.l.b16 %v132
    %v566 = vunpack.c.h.b16 %v132
    %v567 = vunpack.c.l.b16 %v133
    %v568 = vunpack.c.h.b16 %v133
    %v569 = vunpack.c.l.b16 %v134
    %v570 = vunpack.c.h.b16 %v134
    %v571 = vunpack.c.l.b16 %v135
    %v572 = vunpack.c.h.b16 %v135
    %v573 = vunpack.c.l.b16 %v136
    %v574 = vunpack.c.h.b16 %v136
    %v575 = vunpack.c.l.b16 %v137
    %v576 = vunpack.c.h.b16 %v137
    %v577 = vunpack.c.l.b16 %v138
    %v578 = vunpack.c.h.b16 %v138
    %v579 = vunpack.c.l.b16 %v139
    %v580 = vunpack.c.h.b16 %v139
    %v581 = vunpack.c.l.b16 %v140
    %v582 = vunpack.c.h.b16 %v140
    %v583 = vunpack.c.l.b16 %v141
    %v584 = vunpack.c.h.b16 %v141
    %v585 = vunpack.c.l.b16 %v142
    %v586 = vunpack.c.h.b16 %v142
    %v587 = vunpack.c.l.b16 %v143
    %v588 = vunpack.c.h.b16 %v143
    %v589 = vunpack.c.l.b16 %v144
    %v590 = vunpack.c.h.b16 %v144
    %v591 = vunpack.c.l.b16 %v145
    %v592 = vunpack.c.h.b16 %v145
    %v593 = vunpack.c.l.b16 %v146
    %v594 = vunpack.c.h.b16 %v146
    %v595 = vunpack.c.l.b16 %v147
    %v596 = vunpack.c.h.b16 %v147
    %v597 = vunpack.c.l.b16 %v148
    %v598 = vunpack.c.h.b16 %v148
    %v599 = vunpack.c.l.b16 %v149
    %v600 = vunpack.c.h.b16 %v149
    %v601 = vunpack.c.l.b16 %v150
    %v602 = vunpack.c.h.b16 %v150
    %v603 = vunpack.c.l.b16 %v151
    %v604 = vunpack.c.h.b16 %v151
    %v605 = vunpack.c.l.b16 %v152
    %v606 = vunpack.c.h.b16 %v152
    %v607 = vunpack.c.l.b16 %v153
    %v608 = vunpack.c.h.b16 %v153
    %v609 = vunpack.c.l.b16 %v154
    %v610 = vunpack.c.h.b16 %v154
    %v611 = vunpack.c.l.b16 %v155
    %v612 = vunpack.c.h.b16 %v155
    %v613 = vunpack.c.l.b16 %v156
    %v614 = vunpack.c.h.b16 %v156
    %v615 = vunpack.c.l.b16 %v157
    %v616 = vunpack.c.h.b16 %v157
    %v617 = vunpack.c.l.b16 %v158
    %v618 = vunpack.c.h.b16 %v158
    %v619 = vunpack.c.l.b16 %v159
    %v620 = vunpack.c.h.b16 %v159
    %v621 = vunpack.c.l.b16 %v160
    %v622 = vunpack.c.h.b16 %v160
    %v623 = vunpack.c.l.b16 %v161
    %v624 = vunpack.c.h.b16 %v161
    %v625 = vunpack.c.l.b16 %v162
    %v626 = vunpack.c.h.b16 %v162
    %v627 = vunpack.c.l.b16 %v163
    %v628 = vunpack.c.h.b16 %v163
    %v629 = vunpack.c.l.b16 %v164
    %v630 = vunpack.c.h.b16 %v164
    %v631 = vunpack.c.l.b16 %v165
    %v632 = vunpack.c.h.b16 %v165
    %v633 = vunpack.c.l.b16 %v166
    %v634 = vunpack.c.h.b16 %v166
    %v635 = vunpack.c.l.b16 %v167
    %v636 = vunpack.c.h.b16 %v167
    %v637 = vunpack.c.l.b16 %v168
    %v638 = vunpack.c.h.b16 %v168
    %v639 = vunpack.c.l.b16 %v169
    %v640 = vunpack.c.h.b16 %v169
    %v641 = vunpack.c.l.b16 %v170
    %v642 = vunpack.c.h.b16 %v170
    %v643 = vunpack.c.l.b16 %v171
    %v644 = vunpack.c.h.b16 %v171
    %v645 = vunpack.c.l.b16 %v172
    %v646 = vunpack.c.h.b16 %v172
    %v647 = vunpack.c.l.b16 %v173
    %v648 = vunpack.c.h.b16 %v173
    %v649 = vunpack.c.l.b16 %v174
    %v650 = vunpack.c.h.b16 %v174
    %v651 = vunpack.c.l.b16 %v175
    %v652 = vunpack.c.h.b16 %v175
    %v653 = vunpack.c.l.b16 %v176
    %v654 = vunpack.c.h.b16 %v176
    %v655 = vunpack.c.l.b16 %v177
    %v656 = vunpack.c.h.b16 %v177
    %v657 = vunpack.c.l.b16 %v178
    %v658 = vunpack.c.h.b16 %v178
    %v659 = vunpack.c.l.b16 %v179
    %v660 = vunpack.c.h.b16 %v179
    %v661 = vunpack.c.l.b16 %v180
    %v662 = vunpack.c.h.b16 %v180
    %v663 = vunpack.c.l.b16 %v181
    %v664 = vunpack.c.h.b16 %v181
    %v665 = vunpack.c.l.b16 %v182
    %v666 = vunpack.c.h.b16 %v182
    %v667 = vunpack.c.l.b16 %v183
    %v668 = vunpack.c.h.b16 %v183
    %v669 = vunpack.c.l.b16 %v184
    %v670 = vunpack.c.h.b16 %v184
    %v671 = vunpack.c.l.b16 %v185
    %v672 = vunpack.c.h.b16 %v185
    %v673 = vunpack.c.l.b16 %v186
    %v674 = vunpack.c.h.b16 %v186
    %v675 = vunpack.c.l.b16 %v187
    %v676 = vunpack.c.h.b16 %v187
    %v677 = vunpack.c.l.b16 %v188
    %v678 = vunpack.c.h.b16 %v188
    %v679 = vunpack.c.l.b16 %v189
    %v680 = vunpack.c.h.b16 %v189
    %v681 = vunpack.c.l.b16 %v190
    %v682 = vunpack.c.h.b16 %v190
    %v683 = vunpack.c.l.b16 %v191
    %v684 = vunpack.c.h.b16 %v191
    %v685 = vunpack.c.l.b16 %v192
    %v686 = vunpack.c.h.b16 %v192
    %v687 = vunpack.c.l.b16 %v193
    %v688 = vunpack.c.h.b16 %v193
    %v689 = vunpack.c.l.b16 %v194
    %v690 = vunpack.c.h.b16 %v194
    %v691 = vunpack.c.l.b16 %v195
    %v692 = vunpack.c.h.b16 %v195
    %v693 = vunpack.c.l.b16 %v196
    %v694 = vunpack.c.h.b16 %v196
    %v695 = vunpack.c.l.b16 %v197
    %v696 = vunpack.c.h.b16 %v197
    %v697 = vunpack.c.l.b16 %v198
    %v698 = vunpack.c.h.b16 %v198
    %v699 = vunpack.c.l.b16 %v199
    %v700 = vunpack.c.h.b16 %v199
    %v701 = vunpack.c.l.b16 %v200
    %v702 = vunpack.c.h.b16 %v200
    %v703 = vunpack.c.l.b16 %v201
    %v704 = vunpack.c.h.b16 %v201
    %v705 = vunpack.c.l.b16 %v202
    %v706 = vunpack.c.h.b16 %v202
    %v707 = vunpack.c.l.b16 %v203
    %v708 = vunpack.c.h.b16 %v203
    %v709 = vunpack.c.l.b16 %v204
    %v710 = vunpack.c.h.b16 %v204
    %v711 = vunpack.c.l.b16 %v205
    %v712 = vunpack.c.h.b16 %v205
    %v713 = vunpack.c.l.b16 %v206
    %v714 = vunpack.c.h.b16 %v206
    %v715 = vunpack.c.l.b16 %v207
    %v716 = vunpack.c.h.b16 %v207
    %v717 = vunpack.c.l.b16 %v208
    %v718 = vunpack.c.h.b16 %v208
    %v719 = vunpack.c.l.b16 %v209
    %v720 = vunpack.c.h.b16 %v209
    %v721 = vunpack.c.l.b16 %v210
    %v722 = vunpack.c.h.b16 %v210
    %v723 = vunpack.c.l.b16 %v211
    %v724 = vunpack.c.h.b16 %v211
    %v725 = vunpack.c.l.b16 %v212
    %v726 = vunpack.c.h.b16 %v212
    %v727 = vunpack.c.l.b16 %v213
    %v728 = vunpack.c.h.b16 %v213
    %v729 = vunpack.c.l.b16 %v214
    %v730 = vunpack.c.h.b16 %v214
    %v731 = vunpack.c.l.b16 %v215
    %v732 = vunpack.c.h.b16 %v215
    %v733 = vunpack.c.l.b16 %v216
    %v734 = vunpack.c.h.b16 %v216
    %v735 = vunpack.c.l.b16 %v217
    %v736 = vunpack.c.h.b16 %v217
    %v737 = vunpack.c.l.b16 %v218
    %v738 = vunpack.c.h.b16 %v218
    %v739 = vunpack.c.l.b16 %v219
    %v740 = vunpack.c.h.b16 %v219
    %v741 = vunpack.c.l.b16 %v220
    %v742 = vunpack.c.h.b16 %v220
    %v743 = vunpack.c.l.b16 %v221
    %v744 = vunpack.c.h.b16 %v221
    %v745 = vunpack.c.l.b16 %v222
    %v746 = vunpack.c.h.b16 %v222
    %v747 = vunpack.c.l.b16 %v223
    %v748 = vunpack.c.h.b16 %v223
    %v749 = vunpack.c.l.b16 %v224
    %v750 = vunpack.c.h.b16 %v224
    %v751 = vunpack.c.l.b16 %v225
    %v752 = vunpack.c.h.b16 %v225
    %v753 = vunpack.c.l.b16 %v226
    %v754 = vunpack.c.h.b16 %v226
    %v755 = vunpack.c.l.b16 %v227
    %v756 = vunpack.c.h.b16 %v227
    %v757 = vunpack.c.l.b16 %v228
    %v758 = vunpack.c.h.b16 %v228
    %v759 = vunpack.c.l.b16 %v229
    %v760 = vunpack.c.h.b16 %v229
    %v761 = vunpack.c.l.b16 %v230
    %v762 = vunpack.c.h.b16 %v230
    %v763 = vunpack.c.l.b16 %v231
    %v764 = vunpack.c.h.b16 %v231
    %v765 = vunpack.c.l.b16 %v232
    %v766 = vunpack.c.h.b16 %v232
    %v767 = vunpack.c.l.b16 %v233
    %v768 = vunpack.c.h.b16 %v233
    %v769 = vunpack.c.l.b16 %v234
    %v770 = vunpack.c.h.b16 %v234
    %v771 = vunpack.c.l.b16 %v235
    %v772 = vunpack.c.h.b16 %v235
    %v773 = vunpack.c.l.b16 %v236
    %v774 = vunpack.c.h.b16 %v236
    %v775 = vunpack.c.l.b16 %v237
    %v776 = vunpack.c.h.b16 %v237
    %v777 = vunpack.c.l.b16 %v238
    %v778 = vunpack.c.h.b16 %v238
    %v779 = vunpack.c.l.b16 %v239
    %v780 = vunpack.c.h.b16 %v239
    %v781 = vunpack.c.l.b16 %v240
    %v782 = vunpack.c.h.b16 %v240
    %v783 = vunpack.c.l.b16 %v241
    %v784 = vunpack.c.h.b16 %v241
    %v785 = vunpack.c.l.b16 %v242
    %v786 = vunpack.c.h.b16 %v242
    %v787 = vunpack.c.l.b16 %v243
    %v788 = vunpack.c.h.b16 %v243
    %v789 = vunpack.c.l.b16 %v244
    %v790 = vunpack.c.h.b16 %v244
    %v791 = vunpack.c.l.b16 %v245
    %v792 = vunpack.c.h.b16 %v245
    %v793 = vunpack.c.l.b16 %v246
    %v794 = vunpack.c.h.b16 %v246
    %v795 = vunpack.c.l.b16 %v247
    %v796 = vunpack.c.h.b16 %v247
    %v797 = vunpack.c.l.b16 %v248
    %v798 = vunpack.c.h.b16 %v248
    %v799 = vunpack.c.l.b16 %v249
    %v800 = vunpack.c.h.b16 %v249
    %v801 = vunpack.c.l.b16 %v250
    %v802 = vunpack.c.h.b16 %v250
    %v803 = vunpack.c.l.b16 %v251
    %v804 = vunpack.c.h.b16 %v251
    %v805 = vunpack.c.l.b16 %v252
    %v806 = vunpack.c.h.b16 %v252
    %v807 = vunpack.c.l.b16 %v253
    %v808 = vunpack.c.h.b16 %v253
    %v809 = vunpack.c.l.b16 %v254
    %v810 = vunpack.c.h.b16 %v254
    %v811 = vunpack.c.l.b16 %v255
    %v812 = vunpack.c.h.b16 %v255
    %v813 = vunpack.c.l.b16 %v256
    %v814 = vunpack.c.h.b16 %v256
    %v815 = vunpack.c.l.b16 %v257
    %v816 = vunpack.c.h.b16 %v257
    %v817 = vunpack.c.l.b16 %v258
    %v818 = vunpack.c.h.b16 %v258
    %v819 = vunpack.c.l.b16 %v259
    %v820 = vunpack.c.h.b16 %v259
    %v821 = vunpack.c.l.b16 %v260
    %v822 = vunpack.c.h.b16 %v260
    %v823 = vunpack.c.l.b16 %v261
    %v824 = vunpack.c.h.b16 %v261
    %v825 = vunpack.c.l.b16 %v262
    %v826 = vunpack.c.h.b16 %v262
    %v827 = vunpack.c.l.b16 %v263
    %v828 = vunpack.c.h.b16 %v263
    %v829 = vunpack.c.l.b16 %v264
    %v830 = vunpack.c.h.b16 %v264
    %v831 = vunpack.c.l.b16 %v265
    %v832 = vunpack.c.h.b16 %v265
    %v833 = vunpack.c.l.b16 %v266
    %v834 = vunpack.c.h.b16 %v266
    %v835 = vunpack.c.l.b16 %v267
    %v836 = vunpack.c.h.b16 %v267
    %v837 = vunpack.c.l.b16 %v268
    %v838 = vunpack.c.h.b16 %v268
    %v839 = vunpack.c.l.b16 %v269
    %v840 = vunpack.c.h.b16 %v269
    %v841 = vunpack.c.l.b16 %v270
    %v842 = vunpack.c.h.b16 %v270
    %v843 = vunpack.c.l.b16 %v271
    %v844 = vunpack.c.h.b16 %v271
    %v845 = vunpack.c.l.b16 %v272
    %v846 = vunpack.c.h.b16 %v272
    %v847 = vunpack.c.l.b16 %v273
    %v848 = vunpack.c.h.b16 %v273
    %v849 = vunpack.c.l.b16 %v274
    %v850 = vunpack.c.h.b16 %v274
    %v851 = vunpack.c.l.b16 %v275
    %v852 = vunpack.c.h.b16 %v275
    %v853 = vunpack.c.l.b16 %v276
    %v854 = vunpack.c.h.b16 %v276
    %v855 = vunpack.c.l.b16 %v277
    %v856 = vunpack.c.h.b16 %v277
    %v857 = vunpack.c.l.b16 %v278
    %v858 = vunpack.c.h.b16 %v278
    %v859 = vunpack.c.l.b16 %v279
    %v860 = vunpack.c.h.b16 %v279
    %v861 = vunpack.c.l.b16 %v280
    %v862 = vunpack.c.h.b16 %v280
    %v863 = vunpack.c.l.b16 %v281
    %v864 = vunpack.c.h.b16 %v281
    %v865 = vunpack.c.l.b16 %v282
    %v866 = vunpack.c.h.b16 %v282
    %v867 = vunpack.c.l.b16 %v283
    %v868 = vunpack.c.h.b16 %v283
    %v869 = vunpack.c.l.b16 %v284
    %v870 = vunpack.c.h.b16 %v284
    %v871 = vunpack.c.l.b16 %v285
    %v872 = vunpack.c.h.b16 %v285
    %v873 = vunpack.c.l.b16 %v286
    %v874 = vunpack.c.h.b16 %v286
    %v875 = vunpack.c.l.b16 %v287
    %v876 = vunpack.c.h.b16 %v287
    %v877 = vunpack.c.l.b16 %v288
    %v878 = vunpack.c.h.b16 %v288
    %v879 = vunpack.c.l.b16 %v289
    %v880 = vunpack.c.h.b16 %v289
    %v881 = vunpack.c.l.b16 %v290
    %v882 = vunpack.c.h.b16 %v290
    %v883 = vunpack.c.l.b16 %v291
    %v884 = vunpack.c.h.b16 %v291
    %v885 = vunpack.c.l.b16 %v292
    %v886 = vunpack.c.h.b16 %v292
    %v887 = vunpack.c.l.b16 %v293
    %v888 = vunpack.c.h.b16 %v293
    %v889 = vunpack.c.l.b16 %v294
    %v890 = vunpack.c.h.b16 %v294
    %v891 = vunpack.c.l.b16 %v295
    %v892 = vunpack.c.h.b16 %v295
    %v893 = vunpack.c.l.b16 %v296
    %v894 = vunpack.c.h.b16 %v296
    %v895 = vunpack.c.l.b16 %v297
    %v896 = vunpack.c.h.b16 %v297
    %v897 = vunpack.c.l.b16 %v298
    %v898 = vunpack.c.h.b16 %v298
    %v899 = vunpack.c.l.b16 %v299
    %v900 = vunpack.c.h.b16 %v299
    %v901 = vunpack.c.l.b16 %v300
    %v902 = vunpack.c.h.b16 %v300
    %v903 = vunpack.c.l.b16 %v301
    %v904 = vunpack.c.h.b16 %v301
    %v905 = vunpack.c.l.b16 %v302
    %v906 = vunpack.c.h.b16 %v302
    %v907 = vunpack.c.l.b16 %v303
    %v908 = vunpack.c.h.b16 %v303
    %v909 = vunpack.c.l.b16 %v304
    %v910 = vunpack.c.h.b16 %v304
    %v911 = vunpack.c.l.b16 %v305
    %v912 = vunpack.c.h.b16 %v305
    %v913 = vunpack.c.l.b16 %v306
    %v914 = vunpack.c.h.b16 %v306
    %v915 = vunpack.c.l.b16 %v307
    %v916 = vunpack.c.h.b16 %v307
    %v917 = vunpack.c.l.b16 %v308
    %v918 = vunpack.c.h.b16 %v308
    %v919 = vpack.c.b16 %v531, %v527
    %v920 = vpack.c.b16 %v532, %v528
    %v921 = vpack.c.b16 %v533, %v529
    %v922 = vpack.c.b16 %v534, %v530
    %v923 = vpack.c.b16 %v539, %v535
    %v924 = vpack.c.b16 %v540, %v536
    %v925 = vpack.c.b16 %v541, %v537
    %v926 = vpack.c.b16 %v542, %v538
    %v927 = vpack.c.b16 %v547, %v543
    %v928 = vpack.c.b16 %v548, %v544
    %v929 = vpack.c.b16 %v549, %v545
    %v930 = vpack.c.b16 %v550, %v546
    %v931 = vpack.c.b16 %v555, %v551
    %v932 = vpack.c.b16 %v556, %v552
    %v933 = vpack.c.b16 %v557, %v553
    %v934 = vpack.c.b16 %v558, %v554
    %v935 = vpack.c.b16 %v563, %v559
    %v936 = vpack.c.b16 %v564, %v560
    %v937 = vpack.c.b16 %v565, %v561
    %v938 = vpack.c.b16 %v566, %v562
    %v939 = vpack.c.b16 %v571, %v567
    %v940 = vpack.c.b16 %v572, %v568
    %v941 = vpack.c.b16 %v573, %v569
    %v942 = vpack.c.b16 %v574, %v570
    %v943 = vpack.c.b16 %v579, %v575
    %v944 = vpack.c.b16 %v580, %v576
    %v945 = vpack.c.b16 %v581, %v577
    %v946 = vpack.c.b16 %v582, %v578
    %v947 = vpack.c.b16 %v587, %v583
    %v948 = vpack.c.b16 %v588, %v584
    %v949 = vpack.c.b16 %v589, %v585
    %v950 = vpack.c.b16 %v590, %v586
    %v951 = vpack.c.b16 %v595, %v591
    %v952 = vpack.c.b16 %v596, %v592
    %v953 = vpack.c.b16 %v597, %v593
    %v954 = vpack.c.b16 %v598, %v594
    %v955 = vpack.c.b16 %v603, %v599
    %v956 = vpack.c.b16 %v604, %v600
    %v957 = vpack.c.b16 %v605, %v601
    %v958 = vpack.c.b16 %v606, %v602
    %v959 = vpack.c.b16 %v611, %v607
    %v960 = vpack.c.b16 %v612, %v608
    %v961 = vpack.c.b16 %v613, %v609
    %v962 = vpack.c.b16 %v614, %v610
    %v963 = vpack.c.b16 %v619, %v615
    %v964 = vpack.c.b16 %v620, %v616
    %v965 = vpack.c.b16 %v621, %v617
    %v966 = vpack.c.b16 %v622, %v618
    %v967 = vpack.c.b16 %v627, %v623
    %v968 = vpack.c.b16 %v628, %v624
    %v969 = vpack.c.b16 %v629, %v625
    %v970 = vpack.c.b16 %v630, %v626
    %v971 = vpack.c.b16 %v635, %v631
    %v972 = vpack.c.b16 %v636, %v632
    %v973 = vpack.c.b16 %v637, %v633
    %v974 = vpack.c.b16 %v638, %v634
    %v975 = vpack.c.b16 %v643, %v639
    %v976 = vpack.c.b16 %v644, %v640
    %v977 = vpack.c.b16 %v645, %v641
    %v978 = vpack.c.b16 %v646, %v642
    %v979 = vpack.c.b16 %v651, %v647
    %v980 = vpack.c.b16 %v652, %v648
    %v981 = vpack.c.b16 %v653, %v649
    %v982 = vpack.c.b16 %v654, %v650
    %v983 = vpack.c.b16 %v659, %v655
    %v984 = vpack.c.b16 %v660, %v656
    %v985 = vpack.c.b16 %v661, %v657
    %v986 = vpack.c.b16 %v662, %v658
    %v987 = vpack.c.b16 %v667, %v663
    %v988 = vpack.c.b16 %v668, %v664
    %v989 = vpack.c.b16 %v669, %v665
    %v990 = vpack.c.b16 %v670, %v666
    %v991 = vpack.c.b16 %v675, %v671
    %v992 = vpack.c.b16 %v676, %v672
    %v993 = vpack.c.b16 %v677, %v673
    %v994 = vpack.c.b16 %v678, %v674
    %v995 = vpack.c.b16 %v683, %v679
    %v996 = vpack.c.b16 %v684, %v680
    %v997 = vpack.c.b16 %v685, %v681
    %v998 = vpack.c.b16 %v686, %v682
    %v999 = vpack.c.b16 %v691, %v687
    %v1000 = vpack.c.b16 %v692, %v688
    %v1001 = vpack.c.b16 %v693, %v689
    %v1002 = vpack.c.b16 %v694, %v690
    %v1003 = vpack.c.b16 %v699, %v695
    %v1004 = vpack.c.b16 %v700, %v696
    %v1005 = vpack.c.b16 %v701, %v697
    %v1006 = vpack.c.b16 %v702, %v698
    %v1007 = vpack.c.b16 %v707, %v703
    %v1008 = vpack.c.b16 %v708, %v704
    %v1009 = vpack.c.b16 %v709, %v705
    %v1010 = vpack.c.b16 %v710, %v706
    %v1011 = vpack.c.b16 %v715, %v711
    %v1012 = vpack.c.b16 %v716, %v712
    %v1013 = vpack.c.b16 %v717, %v713
    %v1014 = vpack.c.b16 %v718, %v714
    %v1015 = vpack.c.b16 %v723, %v719
    %v1016 = vpack.c.b16 %v724, %v720
    %v1017 = vpack.c.b16 %v725, %v721
    %v1018 = vpack.c.b16 %v726, %v722
    %v1019 = vpack.c.b16 %v731, %v727
    %v1020 = vpack.c.b16 %v732, %v728
    %v1021 = vpack.c.b16 %v733, %v729
    %v1022 = vpack.c.b16 %v734, %v730
    %v1023 = vpack.c.b16 %v739, %v735
    %v1024 = vpack.c.b16 %v740, %v736
    %v1025 = vpack.c.b16 %v741, %v737
    %v1026 = vpack.c.b16 %v742, %v738
    %v1027 = vpack.c.b16 %v747, %v743
    %v1028 = vpack.c.b16 %v748, %v744
    %v1029 = vpack.c.b16 %v749, %v745
    %v1030 = vpack.c.b16 %v750, %v746
    %v1031 = vpack.c.b16 %v755, %v751
    %v1032 = vpack.c.b16 %v756, %v752
    %v1033 = vpack.c.b16 %v757, %v753
    %v1034 = vpack.c.b16 %v758, %v754
    %v1035 = vpack.c.b16 %v763, %v759
    %v1036 = vpack.c.b16 %v764, %v760
    %v1037 = vpack.c.b16 %v765, %v761
    %v1038 = vpack.c.b16 %v766, %v762
    %v1039 = vpack.c.b16 %v771, %v767
    %v1040 = vpack.c.b16 %v772, %v768
    %v1041 = vpack.c.b16 %v773, %v769
    %v1042 = vpack.c.b16 %v774, %v770
    %v1043 = vpack.c.b16 %v779, %v775
    %v1044 = vpack.c.b16 %v780, %v776
    %v1045 = vpack.c.b16 %v781, %v777
    %v1046 = vpack.c.b16 %v782, %v778
    %v1047 = vpack.c.b16 %v787, %v783
    %v1048 = vpack.c.b16 %v788, %v784
    %v1049 = vpack.c.b16 %v789, %v785
    %v1050 = vpack.c.b16 %v790, %v786
    %v1051 = vpack.c.b16 %v795, %v791
    %v1052 = vpack.c.b16 %v796, %v792
    %v1053 = vpack.c.b16 %v797, %v793
    %v1054 = vpack.c.b16 %v798, %v794
    %v1055 = vpack.c.b16 %v803, %v799
    %v1056 = vpack.c.b16 %v804, %v800
    %v1057 = vpack.c.b16 %v805, %v801
    %v1058 = vpack.c.b16 %v806, %v802
    %v1059 = vpack.c.b16 %v811, %v807
    %v1060 = vpack.c.b16 %v812, %v808
    %v1061 = vpack.c.b16 %v813, %v809
    %v1062 = vpack.c.b16 %v814, %v810
    %v1063 = vpack.c.b16 %v819, %v815
    %v1064 = vpack.c.b16 %v820, %v816
    %v1065 = vpack.c.b16 %v821, %v817
    %v1066 = vpack.c.b16 %v822, %v818
    %v1067 = vpack.c.b16 %v827, %v823
    %v1068 = vpack.c.b16 %v828, %v824
    %v1069 = vpack.c.b16 %v829, %v825
    %v1070 = vpack.c.b16 %v830, %v826
    %v1071 = vpack.c.b16 %v835, %v831
    %v1072 = vpack.c.b16 %v836, %v832
    %v1073 = vpack.c.b16 %v837, %v833
    %v1074 = vpack.c.b16 %v838, %v834
    %v1075 = vpack.c.b16 %v843, %v839
    %v1076 = vpack.c.b16 %v844, %v840
    %v1077 = vpack.c.b16 %v845, %v841
    %v1078 = vpack.c.b16 %v846, %v842
    %v1079 = vpack.c.b16 %v851, %v847
    %v1080 = vpack.c.b16 %v852, %v848
    %v1081 = vpack.c.b16 %v853, %v849
    %v1082 = vpack.c.b16 %v854, %v850
    %v1083 = vpack.c.b16 %v859, %v855
    %v1084 = vpack.c.b16 %v860, %v856
    %v1085 = vpack.c.b16 %v861, %v857
    %v1086 = vpack.c.b16 %v862, %v858
    %v1087 = vpack.c.b16 %v867, %v863
    %v1088 = vpack.c.b16 %v868, %v864
    %v1089 = vpack.c.b16 %v869, %v865
    %v1090 = vpack.c.b16 %v870, %v866
    %v1091 = vpack.c.b16 %v875, %v871
    %v1092 = vpack.c.b16 %v876, %v872
    %v1093 = vpack.c.b16 %v877, %v873
    %v1094 = vpack.c.b16 %v878, %v874
    %v1095 = vpack.c.b16 %v883, %v879
    %v1096 = vpack.c.b16 %v884, %v880
    %v1097 = vpack.c.b16 %v885, %v881
    %v1098 = vpack.c.b16 %v886, %v882
    %v1099 = vpack.c.b16 %v891, %v887
    %v1100 = vpack.c.b16 %v892, %v888
    %v1101 = vpack.c.b16 %v893, %v889
    %v1102 = vpack.c.b16 %v894, %v890
    %v1103 = vpack.c.b16 %v899, %v895
    %v1104 = vpack.c.b16 %v900, %v896
    %v1105 = vpack.c.b16 %v901, %v897
    %v1106 = vpack.c.b16 %v902, %v898
    %v1107 = vpack.c.b16 %v907, %v903
    %v1108 = vpack.c.b16 %v908, %v904
    %v1109 = vpack.c.b16 %v909, %v905
    %v1110 = vpack.c.b16 %v910, %v906
    %v1111 = vpack.c.b16 %v915, %v911
    %v1112 = vpack.c.b16 %v916, %v912
    %v1113 = vpack.c.b16 %v917, %v913
    %v1114 = vpack.c.b16 %v918, %v914
    %vm1311 = vcmask 130048
    %v1313 = vsel %vm1311, %v112, 0
    %1315 = vmatprep.subr.bf16.mxu0 %v920
    %1316 = vmatpush1.bf16.msra.mxu0 %v919
    %1317 = vmatprep.subr.bf16.mxu0 %v924
    %1318 = vmatpush1.bf16.msra.mxu0 %v923
    %1319 = vmatprep.subr.bf16.mxu0 %v928
    %1320 = vmatpush1.bf16.msra.mxu0 %v927
    %1321 = vmatprep.subr.bf16.mxu0 %v932
    %1322 = vmatpush1.bf16.msra.mxu0 %v931
    %1323 = vmatprep.subr.bf16.mxu0 %v936
    %1324 = vmatpush1.bf16.msra.mxu0 %v935
    %1325 = vmatprep.subr.bf16.mxu0 %v940
    %1326 = vmatpush1.bf16.msra.mxu0 %v939
    %1327 = vmatprep.subr.bf16.mxu0 %v944
    %1328 = vmatpush1.bf16.msra.mxu0 %v943
    %1329 = vmatprep.subr.bf16.mxu0 %v948
    %1330 = vmatpush1.bf16.msra.mxu0 %v947
    %1331 = vmatprep.subr.bf16.mxu0 %v952
    %1332 = vmatpush1.bf16.msra.mxu0 %v951
    %1333 = vmatprep.subr.bf16.mxu0 %v956
    %1334 = vmatpush1.bf16.msra.mxu0 %v955
    %1335 = vmatprep.subr.bf16.mxu0 %v960
    %1336 = vmatpush1.bf16.msra.mxu0 %v959
    %1337 = vmatprep.subr.bf16.mxu0 %v964
    %1338 = vmatpush1.bf16.msra.mxu0 %v963
    %1339 = vmatprep.subr.bf16.mxu0 %v968
    %1340 = vmatpush1.bf16.msra.mxu0 %v967
    %1341 = vmatprep.subr.bf16.mxu0 %v972
    %1342 = vmatpush1.bf16.msra.mxu0 %v971
    %1343 = vmatprep.subr.bf16.mxu0 %v976
    %1344 = vmatpush1.bf16.msra.mxu0 %v975
    %1345 = vmatprep.subr.bf16.mxu0 %v980
    %1346 = vmatpush1.bf16.msra.mxu0 %v979
    %1347 = vmatprep.mubr.bf16.mxu0 %v107
    %1348 = vmatmul.mubr.bf16.gmra.mrb[0].mxu0 %v106
    %v1349 = vpop.f32.mrb[0].mxu0
    %v1350 = vadd.f32 %v314, %v1349
    %v1351 = vpop.f32.mrb[0].mxu0
    %v1352 = vadd.f32 %v318, %v1351
    %v1353 = vpop.f32.mrb[0].mxu0
    %v1354 = vpop.f32.mrb[0].mxu0
    %1355 = vdwg.mxu0
    %1356 = vmatprep.subr.bf16.mxu0 %v984
    %1357 = vmatpush1.bf16.msra.mxu0 %v983
    %1358 = vmatprep.subr.bf16.mxu0 %v988
    %1359 = vmatpush1.bf16.msra.mxu0 %v987
    %1360 = vmatprep.subr.bf16.mxu0 %v992
    %1361 = vmatpush1.bf16.msra.mxu0 %v991
    %1362 = vmatprep.subr.bf16.mxu0 %v996
    %1363 = vmatpush1.bf16.msra.mxu0 %v995
    %1364 = vmatprep.subr.bf16.mxu0 %v1000
    %1365 = vmatpush1.bf16.msra.mxu0 %v999
    %1366 = vmatprep.subr.bf16.mxu0 %v1004
    %1367 = vmatpush1.bf16.msra.mxu0 %v1003
    %1368 = vmatprep.subr.bf16.mxu0 %v1008
    %1369 = vmatpush1.bf16.msra.mxu0 %v1007
    %1370 = vmatprep.subr.bf16.mxu0 %v1012
    %1371 = vmatpush1.bf16.msra.mxu0 %v1011
    %1372 = vmatprep.subr.bf16.mxu0 %v1016
    %1373 = vmatpush1.bf16.msra.mxu0 %v1015
    %1374 = vmatprep.subr.bf16.mxu0 %v1020
    %1375 = vmatpush1.bf16.msra.mxu0 %v1019
    %1376 = vmatprep.subr.bf16.mxu0 %v1024
    %1377 = vmatpush1.bf16.msra.mxu0 %v1023
    %1378 = vmatprep.subr.bf16.mxu0 %v1028
    %1379 = vmatpush1.bf16.msra.mxu0 %v1027
    %1380 = vmatprep.subr.bf16.mxu0 %v1032
    %1381 = vmatpush1.bf16.msra.mxu0 %v1031
    %1382 = vmatprep.subr.bf16.mxu0 %v1036
    %1383 = vmatpush1.bf16.msra.mxu0 %v1035
    %1384 = vmatprep.subr.bf16.mxu0 %v1040
    %1385 = vmatpush1.bf16.msra.mxu0 %v1039
    %1386 = vmatprep.subr.bf16.mxu0 %v1044
    %1387 = vmatpush1.bf16.msra.mxu0 %v1043
    %1388 = vmatprep.mubr.bf16.mxu0 %v109
    %1389 = vmatmul.mubr.bf16.gmra.mrb[0].mxu0 %v108
    %v1390 = vpop.f32.mrb[0].mxu0
    %v1391 = vadd.f32 %v1350, %v1390
    %v1392 = vpop.f32.mrb[0].mxu0
    %v1393 = vadd.f32 %v1352, %v1392
    %v1394 = vpop.f32.mrb[0].mxu0
    %v1395 = vpop.f32.mrb[0].mxu0
    %1396 = vdwg.mxu0
    %1397 = vmatprep.subr.bf16.mxu0 %v1048
    %1398 = vmatpush1.bf16.msra.mxu0 %v1047
    %1399 = vmatprep.subr.bf16.mxu0 %v1052
    %1400 = vmatpush1.bf16.msra.mxu0 %v1051
    %1401 = vmatprep.subr.bf16.mxu0 %v1056
    %1402 = vmatpush1.bf16.msra.mxu0 %v1055
    %1403 = vmatprep.subr.bf16.mxu0 %v1060
    %1404 = vmatpush1.bf16.msra.mxu0 %v1059
    %1405 = vmatprep.subr.bf16.mxu0 %v1064
    %1406 = vmatpush1.bf16.msra.mxu0 %v1063
    %1407 = vmatprep.subr.bf16.mxu0 %v1068
    %1408 = vmatpush1.bf16.msra.mxu0 %v1067
    %1409 = vmatprep.subr.bf16.mxu0 %v1072
    %1410 = vmatpush1.bf16.msra.mxu0 %v1071
    %1411 = vmatprep.subr.bf16.mxu0 %v1076
    %1412 = vmatpush1.bf16.msra.mxu0 %v1075
    %1413 = vmatprep.subr.bf16.mxu0 %v1080
    %1414 = vmatpush1.bf16.msra.mxu0 %v1079
    %1415 = vmatprep.subr.bf16.mxu0 %v1084
    %1416 = vmatpush1.bf16.msra.mxu0 %v1083
    %1417 = vmatprep.subr.bf16.mxu0 %v1088
    %1418 = vmatpush1.bf16.msra.mxu0 %v1087
    %1419 = vmatprep.subr.bf16.mxu0 %v1092
    %1420 = vmatpush1.bf16.msra.mxu0 %v1091
    %1421 = vmatprep.subr.bf16.mxu0 %v1096
    %1422 = vmatpush1.bf16.msra.mxu0 %v1095
    %1423 = vmatprep.subr.bf16.mxu0 %v1100
    %1424 = vmatpush1.bf16.msra.mxu0 %v1099
    %1425 = vmatprep.subr.bf16.mxu0 %v1104
    %1426 = vmatpush1.bf16.msra.mxu0 %v1103
    %1427 = vmatprep.subr.bf16.mxu0 %v1108
    %1428 = vmatpush1.bf16.msra.mxu0 %v1107
    %1429 = vmatprep.mubr.bf16.mxu0 %v111
    %1430 = vmatmul.mubr.bf16.gmra.mrb[0].mxu0 %v110
    %v1431 = vpop.f32.mrb[0].mxu0
    %v1432 = vadd.f32 %v1391, %v1431
    %v1433 = vpop.f32.mrb[0].mxu0
    %v1434 = vadd.f32 %v1393, %v1433
    %v1435 = vpop.f32.mrb[0].mxu0
    %v1436 = vpop.f32.mrb[0].mxu0
    %1437 = vdwg.mxu0
    %1438 = vmatprep.subr.bf16.mxu0 %v1112
    %1439 = vmatpush1.bf16.msra.mxu0 %v1111
    %1440 = vmatprep.subr.bf16.mxu0 0
    %1441 = vmatpush1.bf16.msra.mxu0 0
    %1442 = vmatprep.subr.bf16.mxu0 0
    %1443 = vmatpush1.bf16.msra.mxu0 0
    %1444 = vmatprep.subr.bf16.mxu0 0
    %1445 = vmatpush1.bf16.msra.mxu0 0
    %1446 = vmatprep.subr.bf16.mxu0 0
    %1447 = vmatpush1.bf16.msra.mxu0 0
    %1448 = vmatprep.subr.bf16.mxu0 0
    %1449 = vmatpush1.bf16.msra.mxu0 0
    %1450 = vmatprep.subr.bf16.mxu0 0
    %1451 = vmatpush1.bf16.msra.mxu0 0
    %1452 = vmatprep.subr.bf16.mxu0 0
    %1453 = vmatpush1.bf16.msra.mxu0 0
    %1454 = vmatprep.subr.bf16.mxu0 0
    %1455 = vmatpush1.bf16.msra.mxu0 0
    %1456 = vmatprep.subr.bf16.mxu0 0
    %1457 = vmatpush1.bf16.msra.mxu0 0
    %1458 = vmatprep.subr.bf16.mxu0 0
    %1459 = vmatpush1.bf16.msra.mxu0 0
    %1460 = vmatprep.subr.bf16.mxu0 0
    %1461 = vmatpush1.bf16.msra.mxu0 0
    %1462 = vmatprep.subr.bf16.mxu0 0
    %1463 = vmatpush1.bf16.msra.mxu0 0
    %1464 = vmatprep.subr.bf16.mxu0 0
    %1465 = vmatpush1.bf16.msra.mxu0 0
    %1466 = vmatprep.subr.bf16.mxu0 0
    %1467 = vmatpush1.bf16.msra.mxu0 0
    %1468 = vmatprep.subr.bf16.mxu0 0
    %1469 = vmatpush1.bf16.msra.mxu0 0
    %1470 = vmatprep.mubr.bf16.mxu0 0
    %1471 = vmatmul.mubr.bf16.gmra.mrb[0].mxu0 %v1313
    %v1472 = vpop.f32.mrb[0].mxu0
    %v1473 = vadd.f32 %v1432, %v1472
    %v1474 = vpop.f32.mrb[0].mxu0
    %v1475 = vadd.f32 %v1434, %v1474
    %v1476 = vpop.f32.mrb[0].mxu0
    %v1477 = vpop.f32.mrb[0].mxu0
    %1478 = vdwg.mxu0
    %1479 = vmatprep.subr.bf16.mxu0 %v922
    %1480 = vmatpush1.bf16.msra.mxu0 %v921
    %1481 = vmatprep.subr.bf16.mxu0 %v926
    %1482 = vmatpush1.bf16.msra.mxu0 %v925
    %1483 = vmatprep.subr.bf16.mxu0 %v930
    %1484 = vmatpush1.bf16.msra.mxu0 %v929
    %1485 = vmatprep.subr.bf16.mxu0 %v934
    %1486 = vmatpush1.bf16.msra.mxu0 %v933
    %1487 = vmatprep.subr.bf16.mxu0 %v938
    %1488 = vmatpush1.bf16.msra.mxu0 %v937
    %1489 = vmatprep.subr.bf16.mxu0 %v942
    %1490 = vmatpush1.bf16.msra.mxu0 %v941
    %1491 = vmatprep.subr.bf16.mxu0 %v946
    %1492 = vmatpush1.bf16.msra.mxu0 %v945
    %1493 = vmatprep.subr.bf16.mxu0 %v950
    %1494 = vmatpush1.bf16.msra.mxu0 %v949
    %1495 = vmatprep.subr.bf16.mxu0 %v954
    %1496 = vmatpush1.bf16.msra.mxu0 %v953
    %1497 = vmatprep.subr.bf16.mxu0 %v958
    %1498 = vmatpush1.bf16.msra.mxu0 %v957
    %1499 = vmatprep.subr.bf16.mxu0 %v962
    %1500 = vmatpush1.bf16.msra.mxu0 %v961
    %1501 = vmatprep.subr.bf16.mxu0 %v966
    %1502 = vmatpush1.bf16.msra.mxu0 %v965
    %1503 = vmatprep.subr.bf16.mxu0 %v970
    %1504 = vmatpush1.bf16.msra.mxu0 %v969
    %1505 = vmatprep.subr.bf16.mxu0 %v974
    %1506 = vmatpush1.bf16.msra.mxu0 %v973
    %1507 = vmatprep.subr.bf16.mxu0 %v978
    %1508 = vmatpush1.bf16.msra.mxu0 %v977
    %1509 = vmatprep.subr.bf16.mxu0 %v982
    %1510 = vmatpush1.bf16.msra.mxu0 %v981
    %1511 = vmatprep.mubr.bf16.mxu0 %v107
    %1512 = vmatmul.mubr.bf16.gmra.mrb[0].mxu0 %v106
    %v1513 = vpop.f32.mrb[0].mxu0
    %v1514 = vadd.f32 %v322, %v1513
    %v1515 = vpop.f32.mrb[0].mxu0
    %v1516 = vadd.f32 %v326, %v1515
    %v1517 = vpop.f32.mrb[0].mxu0
    %v1518 = vpop.f32.mrb[0].mxu0
    %1519 = vdwg.mxu0
    %1520 = vmatprep.subr.bf16.mxu0 %v986
    %1521 = vmatpush1.bf16.msra.mxu0 %v985
    %1522 = vmatprep.subr.bf16.mxu0 %v990
    %1523 = vmatpush1.bf16.msra.mxu0 %v989
    %1524 = vmatprep.subr.bf16.mxu0 %v994
    %1525 = vmatpush1.bf16.msra.mxu0 %v993
    %1526 = vmatprep.subr.bf16.mxu0 %v998
    %1527 = vmatpush1.bf16.msra.mxu0 %v997
    %1528 = vmatprep.subr.bf16.mxu0 %v1002
    %1529 = vmatpush1.bf16.msra.mxu0 %v1001
    %1530 = vmatprep.subr.bf16.mxu0 %v1006
    %1531 = vmatpush1.bf16.msra.mxu0 %v1005
    %1532 = vmatprep.subr.bf16.mxu0 %v1010
    %1533 = vmatpush1.bf16.msra.mxu0 %v1009
    %1534 = vmatprep.subr.bf16.mxu0 %v1014
    %1535 = vmatpush1.bf16.msra.mxu0 %v1013
    %1536 = vmatprep.subr.bf16.mxu0 %v1018
    %1537 = vmatpush1.bf16.msra.mxu0 %v1017
    %1538 = vmatprep.subr.bf16.mxu0 %v1022
    %1539 = vmatpush1.bf16.msra.mxu0 %v1021
    %1540 = vmatprep.subr.bf16.mxu0 %v1026
    %1541 = vmatpush1.bf16.msra.mxu0 %v1025
    %1542 = vmatprep.subr.bf16.mxu0 %v1030
    %1543 = vmatpush1.bf16.msra.mxu0 %v1029
    %1544 = vmatprep.subr.bf16.mxu0 %v1034
    %1545 = vmatpush1.bf16.msra.mxu0 %v1033
    %1546 = vmatprep.subr.bf16.mxu0 %v1038
    %1547 = vmatpush1.bf16.msra.mxu0 %v1037
    %1548 = vmatprep.subr.bf16.mxu0 %v1042
    %1549 = vmatpush1.bf16.msra.mxu0 %v1041
    %1550 = vmatprep.subr.bf16.mxu0 %v1046
    %1551 = vmatpush1.bf16.msra.mxu0 %v1045
    %1552 = vmatprep.mubr.bf16.mxu0 %v109
    %1553 = vmatmul.mubr.bf16.gmra.mrb[0].mxu0 %v108
    %v1554 = vpop.f32.mrb[0].mxu0
    %v1555 = vadd.f32 %v1514, %v1554
    %v1556 = vpop.f32.mrb[0].mxu0
    %v1557 = vadd.f32 %v1516, %v1556
    %v1558 = vpop.f32.mrb[0].mxu0
    %v1559 = vpop.f32.mrb[0].mxu0
    %1560 = vdwg.mxu0
    %1561 = vmatprep.subr.bf16.mxu0 %v1050
    %1562 = vmatpush1.bf16.msra.mxu0 %v1049
    %1563 = vmatprep.subr.bf16.mxu0 %v1054
    %1564 = vmatpush1.bf16.msra.mxu0 %v1053
    %1565 = vmatprep.subr.bf16.mxu0 %v1058
    %1566 = vmatpush1.bf16.msra.mxu0 %v1057
    %1567 = vmatprep.subr.bf16.mxu0 %v1062
    %1568 = vmatpush1.bf16.msra.mxu0 %v1061
    %1569 = vmatprep.subr.bf16.mxu0 %v1066
    %1570 = vmatpush1.bf16.msra.mxu0 %v1065
    %1571 = vmatprep.subr.bf16.mxu0 %v1070
    %1572 = vmatpush1.bf16.msra.mxu0 %v1069
    %1573 = vmatprep.subr.bf16.mxu0 %v1074
    %1574 = vmatpush1.bf16.msra.mxu0 %v1073
    %1575 = vmatprep.subr.bf16.mxu0 %v1078
    %1576 = vmatpush1.bf16.msra.mxu0 %v1077
    %1577 = vmatprep.subr.bf16.mxu0 %v1082
    %1578 = vmatpush1.bf16.msra.mxu0 %v1081
    %1579 = vmatprep.subr.bf16.mxu0 %v1086
    %1580 = vmatpush1.bf16.msra.mxu0 %v1085
    %1581 = vmatprep.subr.bf16.mxu0 %v1090
    %1582 = vmatpush1.bf16.msra.mxu0 %v1089
    %1583 = vmatprep.subr.bf16.mxu0 %v1094
    %1584 = vmatpush1.bf16.msra.mxu0 %v1093
    %1585 = vmatprep.subr.bf16.mxu0 %v1098
    %1586 = vmatpush1.bf16.msra.mxu0 %v1097
    %1587 = vmatprep.subr.bf16.mxu0 %v1102
    %1588 = vmatpush1.bf16.msra.mxu0 %v1101
    %1589 = vmatprep.subr.bf16.mxu0 %v1106
    %1590 = vmatpush1.bf16.msra.mxu0 %v1105
    %1591 = vmatprep.subr.bf16.mxu0 %v1110
    %1592 = vmatpush1.bf16.msra.mxu0 %v1109
    %1593 = vmatprep.mubr.bf16.mxu0 %v111
    %1594 = vmatmul.mubr.bf16.gmra.mrb[0].mxu0 %v110
    %v1595 = vpop.f32.mrb[0].mxu0
    %v1596 = vadd.f32 %v1555, %v1595
    %v1597 = vpop.f32.mrb[0].mxu0
    %v1598 = vadd.f32 %v1557, %v1597
    %v1599 = vpop.f32.mrb[0].mxu0
    %v1600 = vpop.f32.mrb[0].mxu0
    %1601 = vdwg.mxu0
    %1602 = vmatprep.subr.bf16.mxu0 %v1114
    %1603 = vmatpush1.bf16.msra.mxu0 %v1113
    %1604 = vmatprep.subr.bf16.mxu0 0
    %1605 = vmatpush1.bf16.msra.mxu0 0
    %1606 = vmatprep.subr.bf16.mxu0 0
    %1607 = vmatpush1.bf16.msra.mxu0 0
    %1608 = vmatprep.subr.bf16.mxu0 0
    %1609 = vmatpush1.bf16.msra.mxu0 0
    %1610 = vmatprep.subr.bf16.mxu0 0
    %1611 = vmatpush1.bf16.msra.mxu0 0
    %1612 = vmatprep.subr.bf16.mxu0 0
    %1613 = vmatpush1.bf16.msra.mxu0 0
    %1614 = vmatprep.subr.bf16.mxu0 0
    %1615 = vmatpush1.bf16.msra.mxu0 0
    %1616 = vmatprep.subr.bf16.mxu0 0
    %1617 = vmatpush1.bf16.msra.mxu0 0
    %1618 = vmatprep.subr.bf16.mxu0 0
    %1619 = vmatpush1.bf16.msra.mxu0 0
    %1620 = vmatprep.subr.bf16.mxu0 0
    %1621 = vmatpush1.bf16.msra.mxu0 0
    %1622 = vmatprep.subr.bf16.mxu0 0
    %1623 = vmatpush1.bf16.msra.mxu0 0
    %1624 = vmatprep.subr.bf16.mxu0 0
    %1625 = vmatpush1.bf16.msra.mxu0 0
    %1626 = vmatprep.subr.bf16.mxu0 0
    %1627 = vmatpush1.bf16.msra.mxu0 0
    %1628 = vmatprep.subr.bf16.mxu0 0
    %1629 = vmatpush1.bf16.msra.mxu0 0
    %1630 = vmatprep.subr.bf16.mxu0 0
    %1631 = vmatpush1.bf16.msra.mxu0 0
    %1632 = vmatprep.subr.bf16.mxu0 0
    %1633 = vmatpush1.bf16.msra.mxu0 0
    %1634 = vmatprep.mubr.bf16.mxu0 0
    %1635 = vmatmul.mubr.bf16.gmra.mrb[0].mxu0 %v1313
    %v1636 = vpop.f32.mrb[0].mxu0
    %v1637 = vadd.f32 %v1596, %v1636
    %v1638 = vpop.f32.mrb[0].mxu0
    %v1639 = vadd.f32 %v1598, %v1638
    %v1640 = vpop.f32.mrb[0].mxu0
    %v1641 = vpop.f32.mrb[0].mxu0
    %1642 = vdwg.mxu0
    %v1643 = vmax.f32 %v1473, 0.0
    %v1644 = vmax.f32 %v1475, 0.0
    %v1645 = vmax.f32 %v1637, 0.0
    %v1646 = vmax.f32 %v1639, 0.0
    %v1647 = vpack.c.bf16 %v1643, %v1643
    %v1648 = vpack.c.bf16 %v1644, %v1644
    %v1649 = vpack.c.bf16 %v1645, %v1645
    %v1650 = vpack.c.bf16 %v1646, %v1646
    %v1651 = vld [vmem:[#allocation6] sm:$0xff]
    %v1652 = vld [vmem:[#allocation6 + $0x8] sm:$0xff]
    %v1653 = vld [vmem:[#allocation6 + $0x10] sm:$0xff]
    %v1654 = vld [vmem:[#allocation6 + $0x18] sm:$0xff]
    %v1655 = vld [vmem:[#allocation6 + $0x20] sm:$0xff]
    %v1656 = vld [vmem:[#allocation6 + $0x28] sm:$0xff]
    %v1657 = vld [vmem:[#allocation6 + $0x30] sm:$0xff]
    %v1658 = vld [vmem:[#allocation6 + $0x38] sm:$0xff]
    %v1659 = vld [vmem:[#allocation6 + $0x40] sm:$0xff]
    %v1660 = vld [vmem:[#allocation6 + $0x48] sm:$0xff]
    %v1661 = vld [vmem:[#allocation6 + $0x50] sm:$0xff]
    %v1662 = vld [vmem:[#allocation6 + $0x58] sm:$0xff]
    %v1663 = vld [vmem:[#allocation6 + $0x60] sm:$0xff]
    %v1664 = vld [vmem:[#allocation6 + $0x68] sm:$0xff]
    %v1665 = vld [vmem:[#allocation6 + $0x70] sm:$0xff]
    %v1666 = vld [vmem:[#allocation6 + $0x78] sm:$0xff]
    %v1667 = vld [vmem:[#allocation6 + $0x80] sm:$0xff]
    %v1668 = vld [vmem:[#allocation6 + $0x88] sm:$0xff]
    %v1669 = vld [vmem:[#allocation6 + $0x90] sm:$0xff]
    %v1670 = vld [vmem:[#allocation6 + $0x98] sm:$0xff]
    %v1671 = vld [vmem:[#allocation6 + $0xa0] sm:$0xff]
    %v1672 = vld [vmem:[#allocation6 + $0xa8] sm:$0xff]
    %v1673 = vld [vmem:[#allocation6 + $0xb0] sm:$0xff]
    %v1674 = vld [vmem:[#allocation6 + $0xb8] sm:$0xff]
    %v1675 = vld [vmem:[#allocation6 + $0xc0] sm:$0xff]
    %v1676 = vld [vmem:[#allocation6 + $0xc8] sm:$0xff]
    %v1677 = vld [vmem:[#allocation6 + $0xd0] sm:$0xff]
    %v1678 = vld [vmem:[#allocation6 + $0xd8] sm:$0xff]
    %v1679 = vld [vmem:[#allocation6 + $0xe0] sm:$0xff]
    %v1680 = vld [vmem:[#allocation6 + $0xe8] sm:$0xff]
    %v1681 = vld [vmem:[#allocation6 + $0xf0] sm:$0xff]
    %v1682 = vld [vmem:[#allocation6 + $0xf8] sm:$0xff]
    %v1683 = vld [vmem:[#allocation6 + $0x100] sm:$0xff]
    %v1684 = vld [vmem:[#allocation6 + $0x108] sm:$0xff]
    %v1685 = vld [vmem:[#allocation6 + $0x110] sm:$0xff]
    %v1686 = vld [vmem:[#allocation6 + $0x118] sm:$0xff]
    %v1687 = vld [vmem:[#allocation6 + $0x120] sm:$0xff]
    %v1688 = vld [vmem:[#allocation6 + $0x128] sm:$0xff]
    %v1689 = vld [vmem:[#allocation6 + $0x130] sm:$0xff]
    %v1690 = vld [vmem:[#allocation6 + $0x138] sm:$0xff]
    %v1691 = vld [vmem:[#allocation6 + $0x140] sm:$0xff]
    %v1692 = vld [vmem:[#allocation6 + $0x148] sm:$0xff]
    %v1693 = vld [vmem:[#allocation6 + $0x150] sm:$0xff]
    %v1694 = vld [vmem:[#allocation6 + $0x158] sm:$0xff]
    %v1695 = vld [vmem:[#allocation6 + $0x160] sm:$0xff]
    %v1696 = vld [vmem:[#allocation6 + $0x168] sm:$0xff]
    %v1697 = vld [vmem:[#allocation6 + $0x170] sm:$0xff]
    %v1698 = vld [vmem:[#allocation6 + $0x178] sm:$0xff]
    %v1699 = vld [vmem:[#allocation6 + $0x180] sm:$0xff]
    %v1700 = vld [vmem:[#allocation6 + $0x188] sm:$0xff]
    %v1701 = vld [vmem:[#allocation6 + $0x190] sm:$0xff]
    %v1702 = vld [vmem:[#allocation6 + $0x198] sm:$0xff]
    %v1703 = vld [vmem:[#allocation6 + $0x1a0] sm:$0xff]
    %v1704 = vld [vmem:[#allocation6 + $0x1a8] sm:$0xff]
    %v1705 = vld [vmem:[#allocation6 + $0x1b0] sm:$0xff]
    %v1706 = vld [vmem:[#allocation6 + $0x1b8] sm:$0xff]
    %v1707 = vld [vmem:[#allocation6 + $0x1c0] sm:$0xff]
    %v1708 = vld [vmem:[#allocation6 + $0x1c8] sm:$0xff]
    %v1709 = vld [vmem:[#allocation6 + $0x1d0] sm:$0xff]
    %v1710 = vld [vmem:[#allocation6 + $0x1d8] sm:$0xff]
    %v1711 = vld [vmem:[#allocation6 + $0x1e0] sm:$0xff]
    %v1712 = vld [vmem:[#allocation6 + $0x1e8] sm:$0xff]
    %v1713 = vld [vmem:[#allocation6 + $0x1f0] sm:$0xff]
    %v1714 = vld [vmem:[#allocation6 + $0x1f8] sm:$0xff]
    %v1715 = vld [vmem:[%s4] sm:$0x3]
    %v1717 = vlaneseq
    %v1718 = vshrl.u32 %v1717, 7
    %v1719 = vsub.s32 0, %v1718
    %v1720 = vrot.slane %v1715, %v1719
    %v1721 = vlaneseq
    %v1722 = vshrl.u32 %v1721, 7
    %v1723 = vsub.s32 1, %v1722
    %v1724 = vrot.slane %v1715, %v1723
    %v1791 = vunpack.c.l.b16 %v1651
    %v1792 = vunpack.c.h.b16 %v1651
    %v1793 = vunpack.c.l.b16 %v1652
    %v1794 = vunpack.c.h.b16 %v1652
    %v1795 = vunpack.c.l.b16 %v1653
    %v1796 = vunpack.c.h.b16 %v1653
    %v1797 = vunpack.c.l.b16 %v1654
    %v1798 = vunpack.c.h.b16 %v1654
    %v1799 = vunpack.c.l.b16 %v1655
    %v1800 = vunpack.c.h.b16 %v1655
    %v1801 = vunpack.c.l.b16 %v1656
    %v1802 = vunpack.c.h.b16 %v1656
    %v1803 = vunpack.c.l.b16 %v1657
    %v1804 = vunpack.c.h.b16 %v1657
    %v1805 = vunpack.c.l.b16 %v1658
    %v1806 = vunpack.c.h.b16 %v1658
    %v1807 = vunpack.c.l.b16 %v1659
    %v1808 = vunpack.c.h.b16 %v1659
    %v1809 = vunpack.c.l.b16 %v1660
    %v1810 = vunpack.c.h.b16 %v1660
    %v1811 = vunpack.c.l.b16 %v1661
    %v1812 = vunpack.c.h.b16 %v1661
    %v1813 = vunpack.c.l.b16 %v1662
    %v1814 = vunpack.c.h.b16 %v1662
    %v1815 = vunpack.c.l.b16 %v1663
    %v1816 = vunpack.c.h.b16 %v1663
    %v1817 = vunpack.c.l.b16 %v1664
    %v1818 = vunpack.c.h.b16 %v1664
    %v1819 = vunpack.c.l.b16 %v1665
    %v1820 = vunpack.c.h.b16 %v1665
    %v1821 = vunpack.c.l.b16 %v1666
    %v1822 = vunpack.c.h.b16 %v1666
    %v1823 = vunpack.c.l.b16 %v1667
    %v1824 = vunpack.c.h.b16 %v1667
    %v1825 = vunpack.c.l.b16 %v1668
    %v1826 = vunpack.c.h.b16 %v1668
    %v1827 = vunpack.c.l.b16 %v1669
    %v1828 = vunpack.c.h.b16 %v1669
    %v1829 = vunpack.c.l.b16 %v1670
    %v1830 = vunpack.c.h.b16 %v1670
    %v1831 = vunpack.c.l.b16 %v1671
    %v1832 = vunpack.c.h.b16 %v1671
    %v1833 = vunpack.c.l.b16 %v1672
    %v1834 = vunpack.c.h.b16 %v1672
    %v1835 = vunpack.c.l.b16 %v1673
    %v1836 = vunpack.c.h.b16 %v1673
    %v1837 = vunpack.c.l.b16 %v1674
    %v1838 = vunpack.c.h.b16 %v1674
    %v1839 = vunpack.c.l.b16 %v1675
    %v1840 = vunpack.c.h.b16 %v1675
    %v1841 = vunpack.c.l.b16 %v1676
    %v1842 = vunpack.c.h.b16 %v1676
    %v1843 = vunpack.c.l.b16 %v1677
    %v1844 = vunpack.c.h.b16 %v1677
    %v1845 = vunpack.c.l.b16 %v1678
    %v1846 = vunpack.c.h.b16 %v1678
    %v1847 = vunpack.c.l.b16 %v1679
    %v1848 = vunpack.c.h.b16 %v1679
    %v1849 = vunpack.c.l.b16 %v1680
    %v1850 = vunpack.c.h.b16 %v1680
    %v1851 = vunpack.c.l.b16 %v1681
    %v1852 = vunpack.c.h.b16 %v1681
    %v1853 = vunpack.c.l.b16 %v1682
    %v1854 = vunpack.c.h.b16 %v1682
    %v1855 = vunpack.c.l.b16 %v1683
    %v1856 = vunpack.c.h.b16 %v1683
    %v1857 = vunpack.c.l.b16 %v1684
    %v1858 = vunpack.c.h.b16 %v1684
    %v1859 = vunpack.c.l.b16 %v1685
    %v1860 = vunpack.c.h.b16 %v1685
    %v1861 = vunpack.c.l.b16 %v1686
    %v1862 = vunpack.c.h.b16 %v1686
    %v1863 = vunpack.c.l.b16 %v1687
    %v1864 = vunpack.c.h.b16 %v1687
    %v1865 = vunpack.c.l.b16 %v1688
    %v1866 = vunpack.c.h.b16 %v1688
    %v1867 = vunpack.c.l.b16 %v1689
    %v1868 = vunpack.c.h.b16 %v1689
    %v1869 = vunpack.c.l.b16 %v1690
    %v1870 = vunpack.c.h.b16 %v1690
    %v1871 = vunpack.c.l.b16 %v1691
    %v1872 = vunpack.c.h.b16 %v1691
    %v1873 = vunpack.c.l.b16 %v1692
    %v1874 = vunpack.c.h.b16 %v1692
    %v1875 = vunpack.c.l.b16 %v1693
    %v1876 = vunpack.c.h.b16 %v1693
    %v1877 = vunpack.c.l.b16 %v1694
    %v1878 = vunpack.c.h.b16 %v1694
    %v1879 = vunpack.c.l.b16 %v1695
    %v1880 = vunpack.c.h.b16 %v1695
    %v1881 = vunpack.c.l.b16 %v1696
    %v1882 = vunpack.c.h.b16 %v1696
    %v1883 = vunpack.c.l.b16 %v1697
    %v1884 = vunpack.c.h.b16 %v1697
    %v1885 = vunpack.c.l.b16 %v1698
    %v1886 = vunpack.c.h.b16 %v1698
    %v1887 = vunpack.c.l.b16 %v1699
    %v1888 = vunpack.c.h.b16 %v1699
    %v1889 = vunpack.c.l.b16 %v1700
    %v1890 = vunpack.c.h.b16 %v1700
    %v1891 = vunpack.c.l.b16 %v1701
    %v1892 = vunpack.c.h.b16 %v1701
    %v1893 = vunpack.c.l.b16 %v1702
    %v1894 = vunpack.c.h.b16 %v1702
    %v1895 = vunpack.c.l.b16 %v1703
    %v1896 = vunpack.c.h.b16 %v1703
    %v1897 = vunpack.c.l.b16 %v1704
    %v1898 = vunpack.c.h.b16 %v1704
    %v1899 = vunpack.c.l.b16 %v1705
    %v1900 = vunpack.c.h.b16 %v1705
    %v1901 = vunpack.c.l.b16 %v1706
    %v1902 = vunpack.c.h.b16 %v1706
    %v1903 = vunpack.c.l.b16 %v1707
    %v1904 = vunpack.c.h.b16 %v1707
    %v1905 = vunpack.c.l.b16 %v1708
    %v1906 = vunpack.c.h.b16 %v1708
    %v1907 = vunpack.c.l.b16 %v1709
    %v1908 = vunpack.c.h.b16 %v1709
    %v1909 = vunpack.c.l.b16 %v1710
    %v1910 = vunpack.c.h.b16 %v1710
    %v1911 = vunpack.c.l.b16 %v1711
    %v1912 = vunpack.c.h.b16 %v1711
    %v1913 = vunpack.c.l.b16 %v1712
    %v1914 = vunpack.c.h.b16 %v1712
    %v1915 = vunpack.c.l.b16 %v1713
    %v1916 = vunpack.c.h.b16 %v1713
    %v1917 = vunpack.c.l.b16 %v1714
    %v1918 = vunpack.c.h.b16 %v1714
    %v1919 = vpack.c.b16 %v1793, %v1791
    %v1920 = vpack.c.b16 %v1794, %v1792
    %v1921 = vpack.c.b16 %v1797, %v1795
    %v1922 = vpack.c.b16 %v1798, %v1796
    %v1923 = vpack.c.b16 %v1801, %v1799
    %v1924 = vpack.c.b16 %v1802, %v1800
    %v1925 = vpack.c.b16 %v1805, %v1803
    %v1926 = vpack.c.b16 %v1806, %v1804
    %v1927 = vpack.c.b16 %v1809, %v1807
    %v1928 = vpack.c.b16 %v1810, %v1808
    %v1929 = vpack.c.b16 %v1813, %v1811
    %v1930 = vpack.c.b16 %v1814, %v1812
    %v1931 = vpack.c.b16 %v1817, %v1815
    %v1932 = vpack.c.b16 %v1818, %v1816
    %v1933 = vpack.c.b16 %v1821, %v1819
    %v1934 = vpack.c.b16 %v1822, %v1820
    %v1935 = vpack.c.b16 %v1825, %v1823
    %v1936 = vpack.c.b16 %v1826, %v1824
    %v1937 = vpack.c.b16 %v1829, %v1827
    %v1938 = vpack.c.b16 %v1830, %v1828
    %v1939 = vpack.c.b16 %v1833, %v1831
    %v1940 = vpack.c.b16 %v1834, %v1832
    %v1941 = vpack.c.b16 %v1837, %v1835
    %v1942 = vpack.c.b16 %v1838, %v1836
    %v1943 = vpack.c.b16 %v1841, %v1839
    %v1944 = vpack.c.b16 %v1842, %v1840
    %v1945 = vpack.c.b16 %v1845, %v1843
    %v1946 = vpack.c.b16 %v1846, %v1844
    %v1947 = vpack.c.b16 %v1849, %v1847
    %v1948 = vpack.c.b16 %v1850, %v1848
    %v1949 = vpack.c.b16 %v1853, %v1851
    %v1950 = vpack.c.b16 %v1854, %v1852
    %v1951 = vpack.c.b16 %v1857, %v1855
    %v1952 = vpack.c.b16 %v1858, %v1856
    %v1953 = vpack.c.b16 %v1861, %v1859
    %v1954 = vpack.c.b16 %v1862, %v1860
    %v1955 = vpack.c.b16 %v1865, %v1863
    %v1956 = vpack.c.b16 %v1866, %v1864
    %v1957 = vpack.c.b16 %v1869, %v1867
    %v1958 = vpack.c.b16 %v1870, %v1868
    %v1959 = vpack.c.b16 %v1873, %v1871
    %v1960 = vpack.c.b16 %v1874, %v1872
    %v1961 = vpack.c.b16 %v1877, %v1875
    %v1962 = vpack.c.b16 %v1878, %v1876
    %v1963 = vpack.c.b16 %v1881, %v1879
    %v1964 = vpack.c.b16 %v1882, %v1880
    %v1965 = vpack.c.b16 %v1885, %v1883
    %v1966 = vpack.c.b16 %v1886, %v1884
    %v1967 = vpack.c.b16 %v1889, %v1887
    %v1968 = vpack.c.b16 %v1890, %v1888
    %v1969 = vpack.c.b16 %v1893, %v1891
    %v1970 = vpack.c.b16 %v1894, %v1892
    %v1971 = vpack.c.b16 %v1897, %v1895
    %v1972 = vpack.c.b16 %v1898, %v1896
    %v1973 = vpack.c.b16 %v1901, %v1899
    %v1974 = vpack.c.b16 %v1902, %v1900
    %v1975 = vpack.c.b16 %v1905, %v1903
    %v1976 = vpack.c.b16 %v1906, %v1904
    %v1977 = vpack.c.b16 %v1909, %v1907
    %v1978 = vpack.c.b16 %v1910, %v1908
    %v1979 = vpack.c.b16 %v1913, %v1911
    %v1980 = vpack.c.b16 %v1914, %v1912
    %v1981 = vpack.c.b16 %v1917, %v1915
    %v1982 = vpack.c.b16 %v1918, %v1916
    %2047 = vmatprep.subr.bf16.mxu0 %v1920
    %2048 = vmatpush1.bf16.msra.mxu0 %v1919
    %2049 = vmatprep.subr.bf16.mxu0 %v1922
    %2050 = vmatpush1.bf16.msra.mxu0 %v1921
    %2051 = vmatprep.subr.bf16.mxu0 %v1924
    %2052 = vmatpush1.bf16.msra.mxu0 %v1923
    %2053 = vmatprep.subr.bf16.mxu0 %v1926
    %2054 = vmatpush1.bf16.msra.mxu0 %v1925
    %2055 = vmatprep.subr.bf16.mxu0 %v1928
    %2056 = vmatpush1.bf16.msra.mxu0 %v1927
    %2057 = vmatprep.subr.bf16.mxu0 %v1930
    %2058 = vmatpush1.bf16.msra.mxu0 %v1929
    %2059 = vmatprep.subr.bf16.mxu0 %v1932
    %2060 = vmatpush1.bf16.msra.mxu0 %v1931
    %2061 = vmatprep.subr.bf16.mxu0 %v1934
    %2062 = vmatpush1.bf16.msra.mxu0 %v1933
    %2063 = vmatprep.subr.bf16.mxu0 %v1936
    %2064 = vmatpush1.bf16.msra.mxu0 %v1935
    %2065 = vmatprep.subr.bf16.mxu0 %v1938
    %2066 = vmatpush1.bf16.msra.mxu0 %v1937
    %2067 = vmatprep.subr.bf16.mxu0 %v1940
    %2068 = vmatpush1.bf16.msra.mxu0 %v1939
    %2069 = vmatprep.subr.bf16.mxu0 %v1942
    %2070 = vmatpush1.bf16.msra.mxu0 %v1941
    %2071 = vmatprep.subr.bf16.mxu0 %v1944
    %2072 = vmatpush1.bf16.msra.mxu0 %v1943
    %2073 = vmatprep.subr.bf16.mxu0 %v1946
    %2074 = vmatpush1.bf16.msra.mxu0 %v1945
    %2075 = vmatprep.subr.bf16.mxu0 %v1948
    %2076 = vmatpush1.bf16.msra.mxu0 %v1947
    %2077 = vmatprep.subr.bf16.mxu0 %v1950
    %2078 = vmatpush1.bf16.msra.mxu0 %v1949
    %2079 = vmatprep.mubr.bf16.mxu0 %v1648
    %2080 = vmatmul.mubr.bf16.gmra.mrb[0].mxu0 %v1647
    %v2081 = vpop.f32.mrb[0].mxu0
    %v2082 = vadd.f32 %v1720, %v2081
    %v2083 = vpop.f32.mrb[0].mxu0
    %v2084 = vadd.f32 %v1724, %v2083
    %v2085 = vpop.f32.mrb[0].mxu0
    %v2086 = vpop.f32.mrb[0].mxu0
    %2087 = vdwg.mxu0
    %2088 = vmatprep.subr.bf16.mxu0 %v1952
    %2089 = vmatpush1.bf16.msra.mxu0 %v1951
    %2090 = vmatprep.subr.bf16.mxu0 %v1954
    %2091 = vmatpush1.bf16.msra.mxu0 %v1953
    %2092 = vmatprep.subr.bf16.mxu0 %v1956
    %2093 = vmatpush1.bf16.msra.mxu0 %v1955
    %2094 = vmatprep.subr.bf16.mxu0 %v1958
    %2095 = vmatpush1.bf16.msra.mxu0 %v1957
    %2096 = vmatprep.subr.bf16.mxu0 %v1960
    %2097 = vmatpush1.bf16.msra.mxu0 %v1959
    %2098 = vmatprep.subr.bf16.mxu0 %v1962
    %2099 = vmatpush1.bf16.msra.mxu0 %v1961
    %2100 = vmatprep.subr.bf16.mxu0 %v1964
    %2101 = vmatpush1.bf16.msra.mxu0 %v1963
    %2102 = vmatprep.subr.bf16.mxu0 %v1966
    %2103 = vmatpush1.bf16.msra.mxu0 %v1965
    %2104 = vmatprep.subr.bf16.mxu0 %v1968
    %2105 = vmatpush1.bf16.msra.mxu0 %v1967
    %2106 = vmatprep.subr.bf16.mxu0 %v1970
    %2107 = vmatpush1.bf16.msra.mxu0 %v1969
    %2108 = vmatprep.subr.bf16.mxu0 %v1972
    %2109 = vmatpush1.bf16.msra.mxu0 %v1971
    %2110 = vmatprep.subr.bf16.mxu0 %v1974
    %2111 = vmatpush1.bf16.msra.mxu0 %v1973
    %2112 = vmatprep.subr.bf16.mxu0 %v1976
    %2113 = vmatpush1.bf16.msra.mxu0 %v1975
    %2114 = vmatprep.subr.bf16.mxu0 %v1978
    %2115 = vmatpush1.bf16.msra.mxu0 %v1977
    %2116 = vmatprep.subr.bf16.mxu0 %v1980
    %2117 = vmatpush1.bf16.msra.mxu0 %v1979
    %2118 = vmatprep.subr.bf16.mxu0 %v1982
    %2119 = vmatpush1.bf16.msra.mxu0 %v1981
    %2120 = vmatprep.mubr.bf16.mxu0 %v1650
    %2121 = vmatmul.mubr.bf16.gmra.mrb[0].mxu0 %v1649
    %v2122 = vpop.f32.mrb[0].mxu0
    %v2123 = vadd.f32 %v2082, %v2122
    %v2124 = vpop.f32.mrb[0].mxu0
    %v2125 = vadd.f32 %v2084, %v2124
    %v2126 = vpop.f32.mrb[0].mxu0
    %v2127 = vpop.f32.mrb[0].mxu0
    %2128 = vdwg.mxu0
    %v2129 = vmax.f32 %v2123, 0.0
    %v2130 = vmax.f32 %v2125, 0.0
    %v2131 = vpack.c.bf16 %v2129, %v2129
    %v2132 = vpack.c.bf16 %v2130, %v2130
    %v2133 = vld [vmem:[#allocation7] sm:$0xf]
    %v2134 = vld [vmem:[#allocation7 + $0x4] sm:$0xf]
    %v2135 = vld [vmem:[#allocation7 + $0x8] sm:$0xf]
    %v2136 = vld [vmem:[#allocation7 + $0xc] sm:$0xf]
    %v2137 = vld [vmem:[#allocation7 + $0x10] sm:$0xf]
    %v2138 = vld [vmem:[#allocation7 + $0x14] sm:$0xf]
    %v2139 = vld [vmem:[#allocation7 + $0x18] sm:$0xf]
    %v2140 = vld [vmem:[#allocation7 + $0x1c] sm:$0xf]
    %v2141 = vld [vmem:[#allocation7 + $0x20] sm:$0xf]
    %v2142 = vld [vmem:[#allocation7 + $0x24] sm:$0xf]
    %v2143 = vld [vmem:[#allocation7 + $0x28] sm:$0xf]
    %v2144 = vld [vmem:[#allocation7 + $0x2c] sm:$0xf]
    %v2145 = vld [vmem:[#allocation7 + $0x30] sm:$0xf]
    %v2146 = vld [vmem:[#allocation7 + $0x34] sm:$0xf]
    %v2147 = vld [vmem:[#allocation7 + $0x38] sm:$0xf]
    %v2148 = vld [vmem:[#allocation7 + $0x3c] sm:$0xf]
    %v2149 = vld [vmem:[#allocation7 + $0x40] sm:$0xf]
    %v2150 = vld [vmem:[#allocation7 + $0x44] sm:$0xf]
    %v2151 = vld [vmem:[#allocation7 + $0x48] sm:$0xf]
    %v2152 = vld [vmem:[#allocation7 + $0x4c] sm:$0xf]
    %v2153 = vld [vmem:[#allocation7 + $0x50] sm:$0xf]
    %v2154 = vld [vmem:[#allocation7 + $0x54] sm:$0xf]
    %v2155 = vld [vmem:[#allocation7 + $0x58] sm:$0xf]
    %v2156 = vld [vmem:[#allocation7 + $0x5c] sm:$0xf]
    %v2157 = vld [vmem:[#allocation7 + $0x60] sm:$0xf]
    %v2158 = vld [vmem:[#allocation7 + $0x64] sm:$0xf]
    %v2159 = vld [vmem:[#allocation7 + $0x68] sm:$0xf]
    %v2160 = vld [vmem:[#allocation7 + $0x6c] sm:$0xf]
    %v2161 = vld [vmem:[#allocation7 + $0x70] sm:$0xf]
    %v2162 = vld [vmem:[#allocation7 + $0x74] sm:$0xf]
    %v2163 = vld [vmem:[#allocation7 + $0x78] sm:$0xf]
    %v2164 = vld [vmem:[#allocation7 + $0x7c] sm:$0xf]
    %v2165 = vld [vmem:[%s6] sm:$0x1]
    %v2167 = vlaneseq
    %v2168 = vshrl.u32 %v2167, 7
    %v2169 = vsub.s32 0, %v2168
    %v2170 = vrot.slane %v2165, %v2169
    %v2204 = vunpack.c.l.b16 %v2133
    %v2205 = vunpack.c.l.b16 %v2134
    %v2206 = vunpack.c.l.b16 %v2135
    %v2207 = vunpack.c.l.b16 %v2136
    %v2208 = vunpack.c.l.b16 %v2137
    %v2209 = vunpack.c.l.b16 %v2138
    %v2210 = vunpack.c.l.b16 %v2139
    %v2211 = vunpack.c.l.b16 %v2140
    %v2212 = vunpack.c.l.b16 %v2141
    %v2213 = vunpack.c.l.b16 %v2142
    %v2214 = vunpack.c.l.b16 %v2143
    %v2215 = vunpack.c.l.b16 %v2144
    %v2216 = vunpack.c.l.b16 %v2145
    %v2217 = vunpack.c.l.b16 %v2146
    %v2218 = vunpack.c.l.b16 %v2147
    %v2219 = vunpack.c.l.b16 %v2148
    %v2220 = vunpack.c.l.b16 %v2149
    %v2221 = vunpack.c.l.b16 %v2150
    %v2222 = vunpack.c.l.b16 %v2151
    %v2223 = vunpack.c.l.b16 %v2152
    %v2224 = vunpack.c.l.b16 %v2153
    %v2225 = vunpack.c.l.b16 %v2154
    %v2226 = vunpack.c.l.b16 %v2155
    %v2227 = vunpack.c.l.b16 %v2156
    %v2228 = vunpack.c.l.b16 %v2157
    %v2229 = vunpack.c.l.b16 %v2158
    %v2230 = vunpack.c.l.b16 %v2159
    %v2231 = vunpack.c.l.b16 %v2160
    %v2232 = vunpack.c.l.b16 %v2161
    %v2233 = vunpack.c.l.b16 %v2162
    %v2234 = vunpack.c.l.b16 %v2163
    %v2235 = vunpack.c.l.b16 %v2164
    %v2236 = vpack.c.b16 %v2205, %v2204
    %v2237 = vpack.c.b16 %v2207, %v2206
    %v2238 = vpack.c.b16 %v2209, %v2208
    %v2239 = vpack.c.b16 %v2211, %v2210
    %v2240 = vpack.c.b16 %v2213, %v2212
    %v2241 = vpack.c.b16 %v2215, %v2214
    %v2242 = vpack.c.b16 %v2217, %v2216
    %v2243 = vpack.c.b16 %v2219, %v2218
    %v2244 = vpack.c.b16 %v2221, %v2220
    %v2245 = vpack.c.b16 %v2223, %v2222
    %v2246 = vpack.c.b16 %v2225, %v2224
    %v2247 = vpack.c.b16 %v2227, %v2226
    %v2248 = vpack.c.b16 %v2229, %v2228
    %v2249 = vpack.c.b16 %v2231, %v2230
    %v2250 = vpack.c.b16 %v2233, %v2232
    %v2251 = vpack.c.b16 %v2235, %v2234
    %2268 = vmatprep.subr.bf16.mxu0 0
    %2269 = vmatpush1.bf16.msra.mxu0 %v2236
    %2270 = vmatprep.subr.bf16.mxu0 0
    %2271 = vmatpush1.bf16.msra.mxu0 %v2237
    %2272 = vmatprep.subr.bf16.mxu0 0
    %2273 = vmatpush1.bf16.msra.mxu0 %v2238
    %2274 = vmatprep.subr.bf16.mxu0 0
    %2275 = vmatpush1.bf16.msra.mxu0 %v2239
    %2276 = vmatprep.subr.bf16.mxu0 0
    %2277 = vmatpush1.bf16.msra.mxu0 %v2240
    %2278 = vmatprep.subr.bf16.mxu0 0
    %2279 = vmatpush1.bf16.msra.mxu0 %v2241
    %2280 = vmatprep.subr.bf16.mxu0 0
    %2281 = vmatpush1.bf16.msra.mxu0 %v2242
    %2282 = vmatprep.subr.bf16.mxu0 0
    %2283 = vmatpush1.bf16.msra.mxu0 %v2243
    %2284 = vmatprep.subr.bf16.mxu0 0
    %2285 = vmatpush1.bf16.msra.mxu0 %v2244
    %2286 = vmatprep.subr.bf16.mxu0 0
    %2287 = vmatpush1.bf16.msra.mxu0 %v2245
    %2288 = vmatprep.subr.bf16.mxu0 0
    %2289 = vmatpush1.bf16.msra.mxu0 %v2246
    %2290 = vmatprep.subr.bf16.mxu0 0
    %2291 = vmatpush1.bf16.msra.mxu0 %v2247
    %2292 = vmatprep.subr.bf16.mxu0 0
    %2293 = vmatpush1.bf16.msra.mxu0 %v2248
    %2294 = vmatprep.subr.bf16.mxu0 0
    %2295 = vmatpush1.bf16.msra.mxu0 %v2249
    %2296 = vmatprep.subr.bf16.mxu0 0
    %2297 = vmatpush1.bf16.msra.mxu0 %v2250
    %2298 = vmatprep.subr.bf16.mxu0 0
    %2299 = vmatpush1.bf16.msra.mxu0 %v2251
    %2300 = vmatprep.mubr.bf16.mxu0 %v2132
    %2301 = vmatmul.mubr.bf16.gmra.mrb[0].mxu0 %v2131
    %v2302 = vpop.f32.mrb[0].mxu0
    %v2303 = vadd.f32 %v2170, %v2302
    %v2304 = vpop.f32.mrb[0].mxu0
    %v2305 = vpop.f32.mrb[0].mxu0
    %v2306 = vpop.f32.mrb[0].mxu0
    %2307 = vdwg.mxu0
    %v2308 = vmax.f32 %v2303, 0.0
    %v2309 = vpack.c.bf16 %v2308, %v2308
    %v2310 = vld [vmem:[#allocation9] sm:$0xf]
    %v2311 = vld [vmem:[#allocation9 + $0x4] sm:$0xf]
    %v2312 = vld [vmem:[#allocation9 + $0x8] sm:$0xf]
    %v2313 = vld [vmem:[#allocation9 + $0xc] sm:$0xf]
    %v2314 = vld [vmem:[#allocation9 + $0x10] sm:$0xf]
    %v2315 = vld [vmem:[#allocation9 + $0x14] sm:$0xf]
    %v2316 = vld [vmem:[#allocation9 + $0x18] sm:$0xf]
    %v2317 = vld [vmem:[#allocation9 + $0x1c] sm:$0xf]
    %v2318 = vld [vmem:[#allocation9 + $0x20] sm:$0xf]
    %v2319 = vld [vmem:[#allocation9 + $0x24] sm:$0xf]
    %v2320 = vld [vmem:[#allocation9 + $0x28] sm:$0xf]
    %v2321 = vld [vmem:[#allocation9 + $0x2c] sm:$0xf]
    %v2322 = vld [vmem:[#allocation9 + $0x30] sm:$0xf]
    %v2323 = vld [vmem:[#allocation9 + $0x34] sm:$0xf]
    %v2324 = vld [vmem:[#allocation9 + $0x38] sm:$0xf]
    %v2325 = vld [vmem:[#allocation9 + $0x3c] sm:$0xf]
    %v2326 = vld [vmem:[%s8] sm:$0x1]
    %v2328 = vlaneseq
    %v2329 = vshrl.u32 %v2328, 7
    %v2330 = vsub.s32 0, %v2329
    %v2331 = vrot.slane %v2326, %v2330
    %v2349 = vunpack.c.l.b16 %v2310
    %v2350 = vunpack.c.l.b16 %v2311
    %v2351 = vunpack.c.l.b16 %v2312
    %v2352 = vunpack.c.l.b16 %v2313
    %v2353 = vunpack.c.l.b16 %v2314
    %v2354 = vunpack.c.l.b16 %v2315
    %v2355 = vunpack.c.l.b16 %v2316
    %v2356 = vunpack.c.l.b16 %v2317
    %v2357 = vunpack.c.l.b16 %v2318
    %v2358 = vunpack.c.l.b16 %v2319
    %v2359 = vunpack.c.l.b16 %v2320
    %v2360 = vunpack.c.l.b16 %v2321
    %v2361 = vunpack.c.l.b16 %v2322
    %v2362 = vunpack.c.l.b16 %v2323
    %v2363 = vunpack.c.l.b16 %v2324
    %v2364 = vunpack.c.l.b16 %v2325
    %v2365 = vpack.c.b16 %v2350, %v2349
    %v2366 = vpack.c.b16 %v2352, %v2351
    %v2367 = vpack.c.b16 %v2354, %v2353
    %v2368 = vpack.c.b16 %v2356, %v2355
    %v2369 = vpack.c.b16 %v2358, %v2357
    %v2370 = vpack.c.b16 %v2360, %v2359
    %v2371 = vpack.c.b16 %v2362, %v2361
    %v2372 = vpack.c.b16 %v2364, %v2363
    %2381 = vmatprep.subr.bf16.mxu0 0
    %2382 = vmatpush1.bf16.msra.mxu0 %v2365
    %2383 = vmatprep.subr.bf16.mxu0 0
    %2384 = vmatpush1.bf16.msra.mxu0 %v2366
    %2385 = vmatprep.subr.bf16.mxu0 0
    %2386 = vmatpush1.bf16.msra.mxu0 %v2367
    %2387 = vmatprep.subr.bf16.mxu0 0
    %2388 = vmatpush1.bf16.msra.mxu0 %v2368
    %2389 = vmatprep.subr.bf16.mxu0 0
    %2390 = vmatpush1.bf16.msra.mxu0 %v2369
    %2391 = vmatprep.subr.bf16.mxu0 0
    %2392 = vmatpush1.bf16.msra.mxu0 %v2370
    %2393 = vmatprep.subr.bf16.mxu0 0
    %2394 = vmatpush1.bf16.msra.mxu0 %v2371
    %2395 = vmatprep.subr.bf16.mxu0 0
    %2396 = vmatpush1.bf16.msra.mxu0 %v2372
    %2397 = vmatprep.subr.bf16.mxu0 0
    %2398 = vmatpush1.bf16.msra.mxu0 0
    %2399 = vmatprep.subr.bf16.mxu0 0
    %2400 = vmatpush1.bf16.msra.mxu0 0
    %2401 = vmatprep.subr.bf16.mxu0 0
    %2402 = vmatpush1.bf16.msra.mxu0 0
    %2403 = vmatprep.subr.bf16.mxu0 0
    %2404 = vmatpush1.bf16.msra.mxu0 0
    %2405 = vmatprep.subr.bf16.mxu0 0
    %2406 = vmatpush1.bf16.msra.mxu0 0
    %2407 = vmatprep.subr.bf16.mxu0 0
    %2408 = vmatpush1.bf16.msra.mxu0 0
    %2409 = vmatprep.subr.bf16.mxu0 0
    %2410 = vmatpush1.bf16.msra.mxu0 0
    %2411 = vmatprep.subr.bf16.mxu0 0
    %2412 = vmatpush1.bf16.msra.mxu0 0
    %2413 = vmatprep.mubr.bf16.mxu0 0
    %2414 = vmatmul.mubr.bf16.gmra.mrb[0].mxu0 %v2309
    %v2415 = vpop.f32.mrb[0].mxu0
    %v2416 = vadd.f32 %v2331, %v2415
    %v2417 = vpop.f32.mrb[0].mxu0
    %v2418 = vpop.f32.mrb[0].mxu0
    %v2419 = vpop.f32.mrb[0].mxu0
    %2420 = vdwg.mxu0
    %v2421 = vpack.c.bf16 %v2416, %v2416
    %2422 = vst [vmem:[%s9] sm:$0xf] %v2421
    // Predicated region
    $region58: #{mlp_forward.1} parent=1 // pred_check
      _
    $region59: #{mlp_forward.1} parent=1 // pred_check_branch
      %2424 = sbr.rel (0) target = $region61
    $region60: #{mlp_forward.1} parent=1 // pred_region
      _
    $region61: #{mlp_forward.1} parent=1 // pred_fallthru
      _
    // Predicated region
    $region62: #{mlp_forward.1} parent=1 // pred_check
      _
    $region63: #{mlp_forward.1} parent=1 // pred_check_branch
      %2426 = sbr.rel (0) target = $region65
    $region64: #{mlp_forward.1} parent=1 // pred_region
      _
    $region65: #{mlp_forward.1} parent=1 // pred_fallthru
      _
    %2427 = vsyncpa [#allocation3], 1
    %2428 = vsyncpa [#allocation5], 1
    %2429 = vsyncpa [#allocation8], 1

</llo_original>
